<compile_context>
chip_gen: v6e
topology: v6e:2x2x1
jax: 0.10.0
libtpu: 0.0.40
codegen_flags: <defaults>
</compile_context>

<pallas_src>
import functools

import numpy as np
import jax
import jax.numpy as jnp
from jax import lax
from jax.experimental import pallas as pl
from jax.experimental.pallas import tpu as pltpu

BN_EPS = 1e-5


# ---------------------------------------------------------------------------
# Bicubic upsample (torch nn.Upsample(scale_factor=2, mode='bicubic',
# align_corners=False), a=-0.75, border clamp) expressed as dense matrices.
# ---------------------------------------------------------------------------
def _cubic_weight(x, a=-0.75):
    x = abs(float(x))
    if x <= 1.0:
        return (a + 2.0) * x ** 3 - (a + 3.0) * x ** 2 + 1.0
    if x < 2.0:
        return a * x ** 3 - 5.0 * a * x ** 2 + 8.0 * a * x - 4.0 * a
    return 0.0


def bicubic_matrix(n_in, scale=2, a=-0.75):
    """(n_in*scale, n_in) matrix: torch bicubic upsample along one axis."""
    n_out = n_in * scale
    m = np.zeros((n_out, n_in), dtype=np.float32)
    for o in range(n_out):
        src = (o + 0.5) / scale - 0.5
        base = int(np.floor(src))
        t = src - base
        ws = [_cubic_weight(1.0 + t, a), _cubic_weight(t, a),
              _cubic_weight(1.0 - t, a), _cubic_weight(2.0 - t, a)]
        for k, w in enumerate(ws):
            idx = min(max(base - 1 + k, 0), n_in - 1)
            m[o, idx] += w
    return m


def bicubic_kron_t(h, w, scale=2):
    """(H*W, scale^2*H*W): up_flat = x_flat @ kron_t (exact separable 2-D bicubic)."""
    uh = bicubic_matrix(h, scale)      # (2H, H)
    uw = bicubic_matrix(w, scale)      # (2W, W)
    return np.kron(uh, uw).T.astype(np.float32)


def make_tap_masks(h2, w2):
    """(9, H2*W2) 0/1 masks: tap (kh,kw) valid <=> 3x3 neighbour is in-bounds."""
    m = np.zeros((9, h2 * w2), np.float32)
    rows = np.arange(h2)[:, None]
    cols = np.arange(w2)[None, :]
    k = 0
    for kh in range(3):
        for kw in range(3):
            oi, oj = kh - 1, kw - 1
            valid = ((rows + oi >= 0) & (rows + oi < h2) &
                     (cols + oj >= 0) & (cols + oj < w2))
            m[k] = valid.astype(np.float32).reshape(-1)
            k += 1
    return m


# ---------------------------------------------------------------------------
# Single fused kernel (one batch element per grid step, everything in VMEM).
# ---------------------------------------------------------------------------
def up_conv_kernel(x1_ref, x2_ref, ukron_ref, masks_ref,
                   wup_ref, bup_ref,
                   w1a_ref, w1b_ref, s1_ref, t1_ref,
                   w2_ref, s2_ref, t2_ref,
                   o_ref, *, W2):
    f32 = jnp.float32
    HW2 = x2_ref.shape[2]
    masks = masks_ref[...]                          # (9, HW2) 0/1 f32

    def im2col(x):
        # x: (C, HW2) lane-dense. Returns (9*C, HW2): 3x3 taps stacked
        # tap-major / channel-minor, border taps zeroed (== zero padding).
        taps = []
        for kh in range(3):
            for kw in range(3):
                k = kh * 3 + kw
                s = (kh - 1) * W2 + (kw - 1)        # flat-index tap offset
                if s == 0:
                    taps.append(x)
                else:
                    rolled = pltpu.roll(x, (-s) % HW2, axis=1)   # x[p + s] (circular)
                    taps.append(rolled * masks[k:k + 1, :])      # zero wrap/OOB
        return jnp.concatenate(taps, axis=0)

    # --- upsample branch: 1x1 channel mix, then exact separable bicubic x2 as
    #     a single matmul with the (HW, 4*HW) Kronecker operator.  The 1x1 conv
    #     commutes with the (linear) upsample; the bias is added afterwards.
    x1 = x1_ref[0]                                                    # (C_in, HW)
    mixed = jnp.dot(wup_ref[...], x1, preferred_element_type=f32)     # (C_half, HW)
    up = jnp.dot(mixed, ukron_ref[...], preferred_element_type=f32)   # (C_half, HW2)
    up = up + bup_ref[...]

    # --- conv1 (3x3, pad 1) over the *virtual* concat([x2, x1_up]); w1 is split
    #     along input channels so the concatenated activation never exists.
    h = (jnp.dot(w1a_ref[...], im2col(x2_ref[0]), preferred_element_type=f32)
         + jnp.dot(w1b_ref[...], im2col(up), preferred_element_type=f32))
    h = jnp.maximum(h * s1_ref[...] + t1_ref[...], 0.0)               # BN(eval)+ReLU

    # --- conv2 (3x3, pad 1) + BN + ReLU, stored lane-dense (last dim = H2*W2).
    y = jnp.dot(w2_ref[...], im2col(h), preferred_element_type=f32)
    o_ref[0] = jnp.maximum(y * s2_ref[...] + t2_ref[...], 0.0)


# ---------------------------------------------------------------------------
# Wrapper: layout plumbing only (free reshapes + tiny host-built constants).
# ---------------------------------------------------------------------------
def up_conv_forward(x1, x2, p):
    """x1: (N, C_in, H, W) low-res feature; x2: (N, C_in//2, 2H, 2W) skip."""
    N, C_in, H, W = x1.shape
    C_half = C_in // 2
    H2, W2 = 2 * H, 2 * W
    HW, HW2 = H * W, H2 * W2
    C_out = p["w1"].shape[0]
    assert x2.shape == (N, C_half, H2, W2)

    # Lane-dense flat-spatial views (row-major reshapes, no data movement).
    x1f = x1.reshape(N, C_in, HW)
    x2f = x2.reshape(N, C_half, HW2)

    # Host-built constant operators (tiny at these shapes).
    ukron_t = jnp.asarray(bicubic_kron_t(H, W))       # (HW, HW2)
    masks = jnp.asarray(make_tap_masks(H2, W2))       # (9, HW2)

    def flat3x3(w):  # (Co, C, 3, 3) -> (Co, 9*C), tap-major / channel-minor
        co, c = w.shape[0], w.shape[1]
        return jnp.transpose(w, (0, 2, 3, 1)).reshape(co, 9 * c)

    w1a = flat3x3(p["w1"][:, :C_half])                # input channels from x2
    w1b = flat3x3(p["w1"][:, C_half:])                # input channels from x1_up
    w2f = flat3x3(p["w2"])

    bup = p["b_up"].reshape(C_half, 1)
    s1 = p["scale1"].reshape(C_out, 1)
    t1 = p["shift1"].reshape(C_out, 1)
    s2 = p["scale2"].reshape(C_out, 1)
    t2 = p["shift2"].reshape(C_out, 1)

    def rep(shape):  # grid-replicated whole-array operand
        return pl.BlockSpec(shape, lambda n: (0,) * len(shape))

    out = pl.pallas_call(
        functools.partial(up_conv_kernel, W2=W2),
        out_shape=jax.ShapeDtypeStruct((N, C_out, HW2), jnp.float32),
        grid=(N,),
        in_specs=[
            pl.BlockSpec((1, C_in, HW), lambda n: (n, 0, 0)),
            pl.BlockSpec((1, C_half, HW2), lambda n: (n, 0, 0)),
            rep((HW, HW2)),
            rep((9, HW2)),
            rep((C_half, C_in)),
            rep((C_half, 1)),
            rep((C_out, 9 * C_half)),
            rep((C_out, 9 * C_half)),
            rep((C_out, 1)),
            rep((C_out, 1)),
            rep((C_out, 9 * C_out)),
            rep((C_out, 1)),
            rep((C_out, 1)),
        ],
        out_specs=pl.BlockSpec((1, C_out, HW2), lambda n: (n, 0, 0)),
        compiler_params=pltpu.CompilerParams(dimension_semantics=("parallel",)),
    )(x1f, x2f, ukron_t, masks, p["w_up"], bup,
      w1a, w1b, s1, t1, w2f, s2, t2)

    return out.reshape(N, C_out, H2, W2)


# ---------------------------------------------------------------------------
# Parameter init (deterministic, synthetic) + BN(eval) folding.
# ---------------------------------------------------------------------------
def _fold_bn(conv_bias, gamma, beta, mean, var):
    scale = gamma / jnp.sqrt(var + BN_EPS)
    shift = (conv_bias - mean) * scale + beta
    return scale, shift


def init_params(key, channels_in, channels_out):
    ks = jax.random.split(key, 12)
    c_half = channels_in // 2

    def u(k, shape, fan_in):
        bound = 1.0 / np.sqrt(fan_in)
        return jax.random.uniform(k, shape, jnp.float32, -bound, bound)

    # upsample path: Conv2d(C_in, C_in//2, kernel_size=1)
    w_up = u(ks[0], (c_half, channels_in), channels_in)
    b_up = u(ks[1], (c_half,), channels_in)

    # decoder conv1: Conv2d(C_in, C_out, 3, padding=1) + BN(C_out)
    w1 = u(ks[2], (channels_out, channels_in, 3, 3), channels_in * 9)
    b1 = u(ks[3], (channels_out,), channels_in * 9)
    g1 = jax.random.uniform(ks[4], (channels_out,), jnp.float32, 0.5, 1.5)
    be1 = 0.1 * jax.random.normal(ks[5], (channels_out,), jnp.float32)
    m1 = 0.1 * jax.random.normal(ks[6], (channels_out,), jnp.float32)
    v1 = jax.random.uniform(ks[7], (channels_out,), jnp.float32, 0.5, 1.5)
    scale1, shift1 = _fold_bn(b1, g1, be1, m1, v1)

    # decoder conv2: Conv2d(C_out, C_out, 3, padding=1) + BN(C_out)
    w2 = u(ks[8], (channels_out, channels_out, 3, 3), channels_out * 9)
    b2 = u(ks[9], (channels_out,), channels_out * 9)
    g2 = jax.random.uniform(ks[10], (channels_out,), jnp.float32, 0.5, 1.5)
    be2 = 0.1 * jax.random.normal(ks[11], (channels_out,), jnp.float32)
    m2 = jnp.zeros((channels_out,), jnp.float32)
    v2 = jnp.ones((channels_out,), jnp.float32)
    scale2, shift2 = _fold_bn(b2, g2, be2, m2, v2)

    return dict(w_up=w_up, b_up=b_up,
                w1=w1, scale1=scale1, shift1=shift1,
                w2=w2, scale2=scale2, shift2=shift2)


# ---------------------------------------------------------------------------
# Pure-JAX/XLA reference (same math, torch op order) for a sanity check.
# ---------------------------------------------------------------------------
def reference_forward(x1, x2, p):
    N, C_in, H, W = x1.shape
    uh = jnp.asarray(bicubic_matrix(H))       # (2H, H)
    uw = jnp.asarray(bicubic_matrix(W))       # (2W, W)
    up = jnp.einsum('gh,nchw->ncgw', uh, x1)
    up = jnp.einsum('qw,ncgw->ncgq', uw, up)
    x1u = jnp.einsum('oc,ncgq->nogq', p['w_up'], up) + p['b_up'][None, :, None, None]
    x = jnp.concatenate([x2, x1u], axis=1)

    def conv_bn_relu(z, w, scale, shift):
        y = lax.conv_general_dilated(z, w, (1, 1), 'SAME',
                                     dimension_numbers=('NCHW', 'OIHW', 'NCHW'))
        return jnp.maximum(y * scale[None, :, None, None]
                           + shift[None, :, None, None], 0.0)

    h = conv_bn_relu(x, p['w1'], p['scale1'], p['shift1'])
    return conv_bn_relu(h, p['w2'], p['scale2'], p['shift2'])


if __name__ == "__main__":
    key = jax.random.PRNGKey(0)
    k1, k2, k3 = jax.random.split(key, 3)

    N, C_in, C_out = 2, 4, 2
    H, W = 8, 8                                    # x1 spatial; x2 is 2H x 2W

    x1 = jax.random.normal(k1, (N, C_in, H, W), jnp.float32)
    x2 = jax.random.normal(k2, (N, C_in // 2, 2 * H, 2 * W), jnp.float32)
    params = init_params(k3, C_in, C_out)

    out = up_conv_forward(x1, x2, params)
    jax.block_until_ready(out)
    assert out.shape == (N, C_out, 2 * H, 2 * W)

    # Loose-tolerance sanity check against a pure-JAX reference (loose because
    # TPU default matmul precision truncates f32 inputs to bf16 and the two
    # paths group the reductions differently).
    ref = reference_forward(x1, x2, params)
    np.testing.assert_allclose(np.asarray(out), np.asarray(ref),
                               rtol=5e-2, atol=5e-2)

    print("KERNEL_OK")
</pallas_src>

<mosaic_0001>
module attributes {stable_mosaic.version = 11 : i64} {
  func.func @up_conv_kernel(%arg0: i32, %arg1: memref<1x4x64xf32, #tpu.memory_space<vmem>>, %arg2: memref<1x2x256xf32, #tpu.memory_space<vmem>>, %arg3: memref<64x256xf32, #tpu.memory_space<vmem>>, %arg4: memref<9x256xf32, #tpu.memory_space<vmem>>, %arg5: memref<2x4xf32, #tpu.memory_space<vmem>>, %arg6: memref<2x1xf32, #tpu.memory_space<vmem>>, %arg7: memref<2x18xf32, #tpu.memory_space<vmem>>, %arg8: memref<2x18xf32, #tpu.memory_space<vmem>>, %arg9: memref<2x1xf32, #tpu.memory_space<vmem>>, %arg10: memref<2x1xf32, #tpu.memory_space<vmem>>, %arg11: memref<2x18xf32, #tpu.memory_space<vmem>>, %arg12: memref<2x1xf32, #tpu.memory_space<vmem>>, %arg13: memref<2x1xf32, #tpu.memory_space<vmem>>, %arg14: memref<1x2x256xf32, #tpu.memory_space<vmem>>) attributes {dimension_semantics = [#tpu.dimension_semantics<parallel>], iteration_bounds = array<i64: 2>, scalar_prefetch = 0 : i64, scratch_operands = 0 : i64, tpu.core_type = #tpu.core_type<tc>, window_params = [{transform_indices = @transform_0, window_bounds = array<i64: 1, 4, 64>}, {transform_indices = @transform_1, window_bounds = array<i64: 1, 2, 256>}, {pipeline_mode = #tpu.pipeline_mode<synchronous>, transform_indices = @transform_2, window_bounds = array<i64: 64, 256>}, {pipeline_mode = #tpu.pipeline_mode<synchronous>, transform_indices = @transform_3, window_bounds = array<i64: 9, 256>}, {pipeline_mode = #tpu.pipeline_mode<synchronous>, transform_indices = @transform_4, window_bounds = array<i64: 2, 4>}, {pipeline_mode = #tpu.pipeline_mode<synchronous>, transform_indices = @transform_5, window_bounds = array<i64: 2, 1>}, {pipeline_mode = #tpu.pipeline_mode<synchronous>, transform_indices = @transform_6, window_bounds = array<i64: 2, 18>}, {pipeline_mode = #tpu.pipeline_mode<synchronous>, transform_indices = @transform_7, window_bounds = array<i64: 2, 18>}, {pipeline_mode = #tpu.pipeline_mode<synchronous>, transform_indices = @transform_8, window_bounds = array<i64: 2, 1>}, {pipeline_mode = #tpu.pipeline_mode<synchronous>, transform_indices = @transform_9, window_bounds = array<i64: 2, 1>}, {pipeline_mode = #tpu.pipeline_mode<synchronous>, transform_indices = @transform_10, window_bounds = array<i64: 2, 18>}, {pipeline_mode = #tpu.pipeline_mode<synchronous>, transform_indices = @transform_11, window_bounds = array<i64: 2, 1>}, {pipeline_mode = #tpu.pipeline_mode<synchronous>, transform_indices = @transform_12, window_bounds = array<i64: 2, 1>}, {transform_indices = @transform_13, window_bounds = array<i64: 1, 2, 256>}]} {
    %c0 = arith.constant 0 : index
    %c0_0 = arith.constant 0 : index
    %0 = vector.load %arg4[%c0, %c0_0] : memref<9x256xf32, #tpu.memory_space<vmem>>, vector<9x256xf32>
    %c0_1 = arith.constant 0 : index
    %c0_2 = arith.constant 0 : index
    %c0_3 = arith.constant 0 : index
    %1 = vector.load %arg1[%c0_1, %c0_2, %c0_3] : memref<1x4x64xf32, #tpu.memory_space<vmem>>, vector<1x4x64xf32>
    %2 = vector.shape_cast %1 : vector<1x4x64xf32> to vector<4x64xf32>
    %c0_4 = arith.constant 0 : index
    %c0_5 = arith.constant 0 : index
    %3 = vector.load %arg5[%c0_4, %c0_5] : memref<2x4xf32, #tpu.memory_space<vmem>>, vector<2x4xf32>
    %cst = arith.constant dense<0.000000e+00> : vector<2x64xf32>
    %4 = tpu.matmul %3, %2, %cst {dimension_numbers = #tpu.dot_dimension_numbers<[1], [0], [0], [1], [0, 0, 1, 1], [], []>} : vector<2x4xf32>, vector<4x64xf32>, vector<2x64xf32> -> vector<2x64xf32>
    %c0_6 = arith.constant 0 : index
    %c0_7 = arith.constant 0 : index
    %5 = vector.load %arg3[%c0_6, %c0_7] : memref<64x256xf32, #tpu.memory_space<vmem>>, vector<64x256xf32>
    %cst_8 = arith.constant dense<0.000000e+00> : vector<2x256xf32>
    %6 = tpu.matmul %4, %5, %cst_8 {dimension_numbers = #tpu.dot_dimension_numbers<[1], [0], [0], [1], [0, 0, 1, 1], [], []>} : vector<2x64xf32>, vector<64x256xf32>, vector<2x256xf32> -> vector<2x256xf32>
    %c0_9 = arith.constant 0 : index
    %c0_10 = arith.constant 0 : index
    %7 = vector.load %arg6[%c0_9, %c0_10] : memref<2x1xf32, #tpu.memory_space<vmem>>, vector<2x1xf32>
    %8 = vector.broadcast %7 : vector<2x1xf32> to vector<2x256xf32>
    %9 = arith.addf %6, %8 : vector<2x256xf32>
    %c0_11 = arith.constant 0 : index
    %c0_12 = arith.constant 0 : index
    %10 = vector.load %arg7[%c0_11, %c0_12] : memref<2x18xf32, #tpu.memory_space<vmem>>, vector<2x18xf32>
    %c0_13 = arith.constant 0 : index
    %c0_14 = arith.constant 0 : index
    %c0_15 = arith.constant 0 : index
    %11 = vector.load %arg2[%c0_13, %c0_14, %c0_15] : memref<1x2x256xf32, #tpu.memory_space<vmem>>, vector<1x2x256xf32>
    %12 = vector.shape_cast %11 : vector<1x2x256xf32> to vector<2x256xf32>
    %c17_i32 = arith.constant 17 : i32
    %13 = tpu.dynamic_rotate %12 by %c17_i32 dim 1 : vector<2x256xf32>, i32 -> vector<2x256xf32>
    %14 = vector.extract_strided_slice %0 {offsets = [0, 0], sizes = [1, 256], strides = [1, 1]} : vector<9x256xf32> to vector<1x256xf32>
    %15 = vector.broadcast %14 : vector<1x256xf32> to vector<2x256xf32>
    %16 = arith.mulf %13, %15 : vector<2x256xf32>
    %c16_i32 = arith.constant 16 : i32
    %17 = tpu.dynamic_rotate %12 by %c16_i32 dim 1 : vector<2x256xf32>, i32 -> vector<2x256xf32>
    %18 = vector.extract_strided_slice %0 {offsets = [1, 0], sizes = [1, 256], strides = [1, 1]} : vector<9x256xf32> to vector<1x256xf32>
    %19 = vector.broadcast %18 : vector<1x256xf32> to vector<2x256xf32>
    %20 = arith.mulf %17, %19 : vector<2x256xf32>
    %c15_i32 = arith.constant 15 : i32
    %21 = tpu.dynamic_rotate %12 by %c15_i32 dim 1 : vector<2x256xf32>, i32 -> vector<2x256xf32>
    %22 = vector.extract_strided_slice %0 {offsets = [2, 0], sizes = [1, 256], strides = [1, 1]} : vector<9x256xf32> to vector<1x256xf32>
    %23 = vector.broadcast %22 : vector<1x256xf32> to vector<2x256xf32>
    %24 = arith.mulf %21, %23 : vector<2x256xf32>
    %c1_i32 = arith.constant 1 : i32
    %25 = tpu.dynamic_rotate %12 by %c1_i32 dim 1 : vector<2x256xf32>, i32 -> vector<2x256xf32>
    %26 = vector.extract_strided_slice %0 {offsets = [3, 0], sizes = [1, 256], strides = [1, 1]} : vector<9x256xf32> to vector<1x256xf32>
    %27 = vector.broadcast %26 : vector<1x256xf32> to vector<2x256xf32>
    %28 = arith.mulf %25, %27 : vector<2x256xf32>
    %c255_i32 = arith.constant 255 : i32
    %29 = tpu.dynamic_rotate %12 by %c255_i32 dim 1 : vector<2x256xf32>, i32 -> vector<2x256xf32>
    %30 = vector.extract_strided_slice %0 {offsets = [5, 0], sizes = [1, 256], strides = [1, 1]} : vector<9x256xf32> to vector<1x256xf32>
    %31 = vector.broadcast %30 : vector<1x256xf32> to vector<2x256xf32>
    %32 = arith.mulf %29, %31 : vector<2x256xf32>
    %c241_i32 = arith.constant 241 : i32
    %33 = tpu.dynamic_rotate %12 by %c241_i32 dim 1 : vector<2x256xf32>, i32 -> vector<2x256xf32>
    %34 = vector.extract_strided_slice %0 {offsets = [6, 0], sizes = [1, 256], strides = [1, 1]} : vector<9x256xf32> to vector<1x256xf32>
    %35 = vector.broadcast %34 : vector<1x256xf32> to vector<2x256xf32>
    %36 = arith.mulf %33, %35 : vector<2x256xf32>
    %c240_i32 = arith.constant 240 : i32
    %37 = tpu.dynamic_rotate %12 by %c240_i32 dim 1 : vector<2x256xf32>, i32 -> vector<2x256xf32>
    %38 = vector.extract_strided_slice %0 {offsets = [7, 0], sizes = [1, 256], strides = [1, 1]} : vector<9x256xf32> to vector<1x256xf32>
    %39 = vector.broadcast %38 : vector<1x256xf32> to vector<2x256xf32>
    %40 = arith.mulf %37, %39 : vector<2x256xf32>
    %c239_i32 = arith.constant 239 : i32
    %41 = tpu.dynamic_rotate %12 by %c239_i32 dim 1 : vector<2x256xf32>, i32 -> vector<2x256xf32>
    %42 = vector.extract_strided_slice %0 {offsets = [8, 0], sizes = [1, 256], strides = [1, 1]} : vector<9x256xf32> to vector<1x256xf32>
    %43 = vector.broadcast %42 : vector<1x256xf32> to vector<2x256xf32>
    %44 = arith.mulf %41, %43 : vector<2x256xf32>
    %45 = tpu.concatenate %16, %20, %24, %28, %12, %32, %36, %40, %44 in 0 : vector<2x256xf32>, vector<2x256xf32>, vector<2x256xf32>, vector<2x256xf32>, vector<2x256xf32>, vector<2x256xf32>, vector<2x256xf32>, vector<2x256xf32>, vector<2x256xf32> -> vector<18x256xf32>
    %cst_16 = arith.constant dense<0.000000e+00> : vector<2x256xf32>
    %46 = tpu.matmul %10, %45, %cst_16 {dimension_numbers = #tpu.dot_dimension_numbers<[1], [0], [0], [1], [0, 0, 1, 1], [], []>} : vector<2x18xf32>, vector<18x256xf32>, vector<2x256xf32> -> vector<2x256xf32>
    %c0_17 = arith.constant 0 : index
    %c0_18 = arith.constant 0 : index
    %47 = vector.load %arg8[%c0_17, %c0_18] : memref<2x18xf32, #tpu.memory_space<vmem>>, vector<2x18xf32>
    %c17_i32_19 = arith.constant 17 : i32
    %48 = tpu.dynamic_rotate %9 by %c17_i32_19 dim 1 : vector<2x256xf32>, i32 -> vector<2x256xf32>
    %49 = vector.extract_strided_slice %0 {offsets = [0, 0], sizes = [1, 256], strides = [1, 1]} : vector<9x256xf32> to vector<1x256xf32>
    %50 = vector.broadcast %49 : vector<1x256xf32> to vector<2x256xf32>
    %51 = arith.mulf %48, %50 : vector<2x256xf32>
    %c16_i32_20 = arith.constant 16 : i32
    %52 = tpu.dynamic_rotate %9 by %c16_i32_20 dim 1 : vector<2x256xf32>, i32 -> vector<2x256xf32>
    %53 = vector.extract_strided_slice %0 {offsets = [1, 0], sizes = [1, 256], strides = [1, 1]} : vector<9x256xf32> to vector<1x256xf32>
    %54 = vector.broadcast %53 : vector<1x256xf32> to vector<2x256xf32>
    %55 = arith.mulf %52, %54 : vector<2x256xf32>
    %c15_i32_21 = arith.constant 15 : i32
    %56 = tpu.dynamic_rotate %9 by %c15_i32_21 dim 1 : vector<2x256xf32>, i32 -> vector<2x256xf32>
    %57 = vector.extract_strided_slice %0 {offsets = [2, 0], sizes = [1, 256], strides = [1, 1]} : vector<9x256xf32> to vector<1x256xf32>
    %58 = vector.broadcast %57 : vector<1x256xf32> to vector<2x256xf32>
    %59 = arith.mulf %56, %58 : vector<2x256xf32>
    %c1_i32_22 = arith.constant 1 : i32
    %60 = tpu.dynamic_rotate %9 by %c1_i32_22 dim 1 : vector<2x256xf32>, i32 -> vector<2x256xf32>
    %61 = vector.extract_strided_slice %0 {offsets = [3, 0], sizes = [1, 256], strides = [1, 1]} : vector<9x256xf32> to vector<1x256xf32>
    %62 = vector.broadcast %61 : vector<1x256xf32> to vector<2x256xf32>
    %63 = arith.mulf %60, %62 : vector<2x256xf32>
    %c255_i32_23 = arith.constant 255 : i32
    %64 = tpu.dynamic_rotate %9 by %c255_i32_23 dim 1 : vector<2x256xf32>, i32 -> vector<2x256xf32>
    %65 = vector.extract_strided_slice %0 {offsets = [5, 0], sizes = [1, 256], strides = [1, 1]} : vector<9x256xf32> to vector<1x256xf32>
    %66 = vector.broadcast %65 : vector<1x256xf32> to vector<2x256xf32>
    %67 = arith.mulf %64, %66 : vector<2x256xf32>
    %c241_i32_24 = arith.constant 241 : i32
    %68 = tpu.dynamic_rotate %9 by %c241_i32_24 dim 1 : vector<2x256xf32>, i32 -> vector<2x256xf32>
    %69 = vector.extract_strided_slice %0 {offsets = [6, 0], sizes = [1, 256], strides = [1, 1]} : vector<9x256xf32> to vector<1x256xf32>
    %70 = vector.broadcast %69 : vector<1x256xf32> to vector<2x256xf32>
    %71 = arith.mulf %68, %70 : vector<2x256xf32>
    %c240_i32_25 = arith.constant 240 : i32
    %72 = tpu.dynamic_rotate %9 by %c240_i32_25 dim 1 : vector<2x256xf32>, i32 -> vector<2x256xf32>
    %73 = vector.extract_strided_slice %0 {offsets = [7, 0], sizes = [1, 256], strides = [1, 1]} : vector<9x256xf32> to vector<1x256xf32>
    %74 = vector.broadcast %73 : vector<1x256xf32> to vector<2x256xf32>
    %75 = arith.mulf %72, %74 : vector<2x256xf32>
    %c239_i32_26 = arith.constant 239 : i32
    %76 = tpu.dynamic_rotate %9 by %c239_i32_26 dim 1 : vector<2x256xf32>, i32 -> vector<2x256xf32>
    %77 = vector.extract_strided_slice %0 {offsets = [8, 0], sizes = [1, 256], strides = [1, 1]} : vector<9x256xf32> to vector<1x256xf32>
    %78 = vector.broadcast %77 : vector<1x256xf32> to vector<2x256xf32>
    %79 = arith.mulf %76, %78 : vector<2x256xf32>
    %80 = tpu.concatenate %51, %55, %59, %63, %9, %67, %71, %75, %79 in 0 : vector<2x256xf32>, vector<2x256xf32>, vector<2x256xf32>, vector<2x256xf32>, vector<2x256xf32>, vector<2x256xf32>, vector<2x256xf32>, vector<2x256xf32>, vector<2x256xf32> -> vector<18x256xf32>
    %cst_27 = arith.constant dense<0.000000e+00> : vector<2x256xf32>
    %81 = tpu.matmul %47, %80, %cst_27 {dimension_numbers = #tpu.dot_dimension_numbers<[1], [0], [0], [1], [0, 0, 1, 1], [], []>} : vector<2x18xf32>, vector<18x256xf32>, vector<2x256xf32> -> vector<2x256xf32>
    %82 = arith.addf %46, %81 : vector<2x256xf32>
    %c0_28 = arith.constant 0 : index
    %c0_29 = arith.constant 0 : index
    %83 = vector.load %arg9[%c0_28, %c0_29] : memref<2x1xf32, #tpu.memory_space<vmem>>, vector<2x1xf32>
    %84 = vector.broadcast %83 : vector<2x1xf32> to vector<2x256xf32>
    %85 = arith.mulf %82, %84 : vector<2x256xf32>
    %c0_30 = arith.constant 0 : index
    %c0_31 = arith.constant 0 : index
    %86 = vector.load %arg10[%c0_30, %c0_31] : memref<2x1xf32, #tpu.memory_space<vmem>>, vector<2x1xf32>
    %87 = vector.broadcast %86 : vector<2x1xf32> to vector<2x256xf32>
    %88 = arith.addf %85, %87 : vector<2x256xf32>
    %cst_32 = arith.constant 0.000000e+00 : f32
    %89 = vector.broadcast %cst_32 : f32 to vector<2x256xf32>
    %90 = arith.maximumf %88, %89 : vector<2x256xf32>
    %c0_33 = arith.constant 0 : index
    %c0_34 = arith.constant 0 : index
    %91 = vector.load %arg11[%c0_33, %c0_34] : memref<2x18xf32, #tpu.memory_space<vmem>>, vector<2x18xf32>
    %c17_i32_35 = arith.constant 17 : i32
    %92 = tpu.dynamic_rotate %90 by %c17_i32_35 dim 1 : vector<2x256xf32>, i32 -> vector<2x256xf32>
    %93 = vector.extract_strided_slice %0 {offsets = [0, 0], sizes = [1, 256], strides = [1, 1]} : vector<9x256xf32> to vector<1x256xf32>
    %94 = vector.broadcast %93 : vector<1x256xf32> to vector<2x256xf32>
    %95 = arith.mulf %92, %94 : vector<2x256xf32>
    %c16_i32_36 = arith.constant 16 : i32
    %96 = tpu.dynamic_rotate %90 by %c16_i32_36 dim 1 : vector<2x256xf32>, i32 -> vector<2x256xf32>
    %97 = vector.extract_strided_slice %0 {offsets = [1, 0], sizes = [1, 256], strides = [1, 1]} : vector<9x256xf32> to vector<1x256xf32>
    %98 = vector.broadcast %97 : vector<1x256xf32> to vector<2x256xf32>
    %99 = arith.mulf %96, %98 : vector<2x256xf32>
    %c15_i32_37 = arith.constant 15 : i32
    %100 = tpu.dynamic_rotate %90 by %c15_i32_37 dim 1 : vector<2x256xf32>, i32 -> vector<2x256xf32>
    %101 = vector.extract_strided_slice %0 {offsets = [2, 0], sizes = [1, 256], strides = [1, 1]} : vector<9x256xf32> to vector<1x256xf32>
    %102 = vector.broadcast %101 : vector<1x256xf32> to vector<2x256xf32>
    %103 = arith.mulf %100, %102 : vector<2x256xf32>
    %c1_i32_38 = arith.constant 1 : i32
    %104 = tpu.dynamic_rotate %90 by %c1_i32_38 dim 1 : vector<2x256xf32>, i32 -> vector<2x256xf32>
    %105 = vector.extract_strided_slice %0 {offsets = [3, 0], sizes = [1, 256], strides = [1, 1]} : vector<9x256xf32> to vector<1x256xf32>
    %106 = vector.broadcast %105 : vector<1x256xf32> to vector<2x256xf32>
    %107 = arith.mulf %104, %106 : vector<2x256xf32>
    %c255_i32_39 = arith.constant 255 : i32
    %108 = tpu.dynamic_rotate %90 by %c255_i32_39 dim 1 : vector<2x256xf32>, i32 -> vector<2x256xf32>
    %109 = vector.extract_strided_slice %0 {offsets = [5, 0], sizes = [1, 256], strides = [1, 1]} : vector<9x256xf32> to vector<1x256xf32>
    %110 = vector.broadcast %109 : vector<1x256xf32> to vector<2x256xf32>
    %111 = arith.mulf %108, %110 : vector<2x256xf32>
    %c241_i32_40 = arith.constant 241 : i32
    %112 = tpu.dynamic_rotate %90 by %c241_i32_40 dim 1 : vector<2x256xf32>, i32 -> vector<2x256xf32>
    %113 = vector.extract_strided_slice %0 {offsets = [6, 0], sizes = [1, 256], strides = [1, 1]} : vector<9x256xf32> to vector<1x256xf32>
    %114 = vector.broadcast %113 : vector<1x256xf32> to vector<2x256xf32>
    %115 = arith.mulf %112, %114 : vector<2x256xf32>
    %c240_i32_41 = arith.constant 240 : i32
    %116 = tpu.dynamic_rotate %90 by %c240_i32_41 dim 1 : vector<2x256xf32>, i32 -> vector<2x256xf32>
    %117 = vector.extract_strided_slice %0 {offsets = [7, 0], sizes = [1, 256], strides = [1, 1]} : vector<9x256xf32> to vector<1x256xf32>
    %118 = vector.broadcast %117 : vector<1x256xf32> to vector<2x256xf32>
    %119 = arith.mulf %116, %118 : vector<2x256xf32>
    %c239_i32_42 = arith.constant 239 : i32
    %120 = tpu.dynamic_rotate %90 by %c239_i32_42 dim 1 : vector<2x256xf32>, i32 -> vector<2x256xf32>
    %121 = vector.extract_strided_slice %0 {offsets = [8, 0], sizes = [1, 256], strides = [1, 1]} : vector<9x256xf32> to vector<1x256xf32>
    %122 = vector.broadcast %121 : vector<1x256xf32> to vector<2x256xf32>
    %123 = arith.mulf %120, %122 : vector<2x256xf32>
    %124 = tpu.concatenate %95, %99, %103, %107, %90, %111, %115, %119, %123 in 0 : vector<2x256xf32>, vector<2x256xf32>, vector<2x256xf32>, vector<2x256xf32>, vector<2x256xf32>, vector<2x256xf32>, vector<2x256xf32>, vector<2x256xf32>, vector<2x256xf32> -> vector<18x256xf32>
    %cst_43 = arith.constant dense<0.000000e+00> : vector<2x256xf32>
    %125 = tpu.matmul %91, %124, %cst_43 {dimension_numbers = #tpu.dot_dimension_numbers<[1], [0], [0], [1], [0, 0, 1, 1], [], []>} : vector<2x18xf32>, vector<18x256xf32>, vector<2x256xf32> -> vector<2x256xf32>
    %c0_44 = arith.constant 0 : index
    %c0_45 = arith.constant 0 : index
    %126 = vector.load %arg12[%c0_44, %c0_45] : memref<2x1xf32, #tpu.memory_space<vmem>>, vector<2x1xf32>
    %127 = vector.broadcast %126 : vector<2x1xf32> to vector<2x256xf32>
    %128 = arith.mulf %125, %127 : vector<2x256xf32>
    %c0_46 = arith.constant 0 : index
    %c0_47 = arith.constant 0 : index
    %129 = vector.load %arg13[%c0_46, %c0_47] : memref<2x1xf32, #tpu.memory_space<vmem>>, vector<2x1xf32>
    %130 = vector.broadcast %129 : vector<2x1xf32> to vector<2x256xf32>
    %131 = arith.addf %128, %130 : vector<2x256xf32>
    %cst_48 = arith.constant 0.000000e+00 : f32
    %132 = vector.broadcast %cst_48 : f32 to vector<2x256xf32>
    %133 = arith.maximumf %131, %132 : vector<2x256xf32>
    %c0_49 = arith.constant 0 : index
    %c0_50 = arith.constant 0 : index
    %c0_51 = arith.constant 0 : index
    %134 = vector.load %arg14[%c0_49, %c0_50, %c0_51] : memref<1x2x256xf32, #tpu.memory_space<vmem>>, vector<1x2x256xf32>
    %135 = vector.shape_cast %134 : vector<1x2x256xf32> to vector<2x256xf32>
    %136 = vector.shape_cast %133 : vector<2x256xf32> to vector<1x2x256xf32>
    tpu.vector_store %arg14[%c0_49, %c0_50, %c0_51], %136 {strides = array<i32>} : memref<1x2x256xf32, #tpu.memory_space<vmem>>, vector<1x2x256xf32>,
    return
  }
  func.func @transform_0(%arg0: i32) -> (i32, i32, i32) {
    %c0_i32 = arith.constant 0 : i32
    %c0_i32_0 = arith.constant 0 : i32
    %c0_i32_1 = arith.constant 0 : i32
    return %arg0, %c0_i32, %c0_i32_0 : i32, i32, i32
  }
  func.func @transform_1(%arg0: i32) -> (i32, i32, i32) {
    %c0_i32 = arith.constant 0 : i32
    %c0_i32_0 = arith.constant 0 : i32
    %c0_i32_1 = arith.constant 0 : i32
    return %arg0, %c0_i32, %c0_i32_0 : i32, i32, i32
  }
  func.func @transform_2(%arg0: i32) -> (i32, i32) {
    %c0_i32 = arith.constant 0 : i32
    %c0_i32_0 = arith.constant 0 : i32
    %c0_i32_1 = arith.constant 0 : i32
    return %c0_i32, %c0_i32_0 : i32, i32
  }
  func.func @transform_3(%arg0: i32) -> (i32, i32) {
    %c0_i32 = arith.constant 0 : i32
    %c0_i32_0 = arith.constant 0 : i32
    %c0_i32_1 = arith.constant 0 : i32
    return %c0_i32, %c0_i32_0 : i32, i32
  }
  func.func @transform_4(%arg0: i32) -> (i32, i32) {
    %c0_i32 = arith.constant 0 : i32
    %c0_i32_0 = arith.constant 0 : i32
    %c0_i32_1 = arith.constant 0 : i32
    return %c0_i32, %c0_i32_0 : i32, i32
  }
  func.func @transform_5(%arg0: i32) -> (i32, i32) {
    %c0_i32 = arith.constant 0 : i32
    %c0_i32_0 = arith.constant 0 : i32
    %c0_i32_1 = arith.constant 0 : i32
    return %c0_i32, %c0_i32_0 : i32, i32
  }
  func.func @transform_6(%arg0: i32) -> (i32, i32) {
    %c0_i32 = arith.constant 0 : i32
    %c0_i32_0 = arith.constant 0 : i32
    %c0_i32_1 = arith.constant 0 : i32
    return %c0_i32, %c0_i32_0 : i32, i32
  }
  func.func @transform_7(%arg0: i32) -> (i32, i32) {
    %c0_i32 = arith.constant 0 : i32
    %c0_i32_0 = arith.constant 0 : i32
    %c0_i32_1 = arith.constant 0 : i32
    return %c0_i32, %c0_i32_0 : i32, i32
  }
  func.func @transform_8(%arg0: i32) -> (i32, i32) {
    %c0_i32 = arith.constant 0 : i32
    %c0_i32_0 = arith.constant 0 : i32
    %c0_i32_1 = arith.constant 0 : i32
    return %c0_i32, %c0_i32_0 : i32, i32
  }
  func.func @transform_9(%arg0: i32) -> (i32, i32) {
    %c0_i32 = arith.constant 0 : i32
    %c0_i32_0 = arith.constant 0 : i32
    %c0_i32_1 = arith.constant 0 : i32
    return %c0_i32, %c0_i32_0 : i32, i32
  }
  func.func @transform_10(%arg0: i32) -> (i32, i32) {
    %c0_i32 = arith.constant 0 : i32
    %c0_i32_0 = arith.constant 0 : i32
    %c0_i32_1 = arith.constant 0 : i32
    return %c0_i32, %c0_i32_0 : i32, i32
  }
  func.func @transform_11(%arg0: i32) -> (i32, i32) {
    %c0_i32 = arith.constant 0 : i32
    %c0_i32_0 = arith.constant 0 : i32
    %c0_i32_1 = arith.constant 0 : i32
    return %c0_i32, %c0_i32_0 : i32, i32
  }
  func.func @transform_12(%arg0: i32) -> (i32, i32) {
    %c0_i32 = arith.constant 0 : i32
    %c0_i32_0 = arith.constant 0 : i32
    %c0_i32_1 = arith.constant 0 : i32
    return %c0_i32, %c0_i32_0 : i32, i32
  }
  func.func @transform_13(%arg0: i32) -> (i32, i32, i32) {
    %c0_i32 = arith.constant 0 : i32
    %c0_i32_0 = arith.constant 0 : i32
    %c0_i32_1 = arith.constant 0 : i32
    return %arg0, %c0_i32, %c0_i32_0 : i32, i32, i32
  }
}

</mosaic_0001>

<llo_original>
// kernel: tpu_custom_call.1
$region0: #{tpu_custom_call.1}
  #allocation0 [shape = 'u32[]', space=smem, size = 0x4, offset = 0x4, fixed_abs, tag = 'smem constant byte address 0x4 - core index']
  #allocation1 [shape = 'u32[144,128]{1,0:T(1,128)}', space=vmem, size = 0x12000, scoped, tag = 'internal scratch']
  %s0 = inlined_call_operand.vmem [shape: f32[2,4,64], index: 0, kind: input, shape index: {}]
  %s1 = inlined_call_operand.vmem [shape: f32[2,2,256], index: 1, kind: input, shape index: {}]
  %s2 = inlined_call_operand.hbm [shape: f32[64,256], index: 2, kind: input, shape index: {}]
  %s3 = inlined_call_operand.hbm [shape: f32[9,256], index: 3, kind: input, shape index: {}]
  %s4 = inlined_call_operand.vmem [shape: f32[2,4], index: 4, kind: input, shape index: {}]
  %s5 = inlined_call_operand.vmem [shape: f32[2,1], index: 5, kind: input, shape index: {}]
  %s6 = inlined_call_operand.vmem [shape: f32[2,18], index: 6, kind: input, shape index: {}]
  %s7 = inlined_call_operand.vmem [shape: f32[2,18], index: 7, kind: input, shape index: {}]
  %s8 = inlined_call_operand.vmem [shape: f32[2,1], index: 8, kind: input, shape index: {}]
  %s9 = inlined_call_operand.vmem [shape: f32[2,1], index: 9, kind: input, shape index: {}]
  %s10 = inlined_call_operand.vmem [shape: f32[2,18], index: 10, kind: input, shape index: {}]
  %s11 = inlined_call_operand.vmem [shape: f32[2,1], index: 11, kind: input, shape index: {}]
  %s12 = inlined_call_operand.vmem [shape: f32[2,1], index: 12, kind: input, shape index: {}]
  %s13 = inlined_call_operand.hbm [shape: f32[2,2,256], index: 13, kind: output, shape index: {}]
  %s14 = sld [smem:[#allocation0]]
  $region93: #{tpu_custom_call.1} parent=0
    _
  %s16 = ssub.s32 1, %s14
  %s17 = scalar_select 0, %s16, %s14
  $region1: #{tpu_custom_call.1} parent=0
    #allocation2 [shape = 'u8[65536]{0}', space=vmem, size = 0x10000, scoped, tag = 'input window, operand 2, single buffered']
    #allocation3 [shape = 's32[2]{0}', space=sflag, size = 0x8, scoped, tag = 'scoped memory for tpu_custom_call.1']
    #allocation4 [shape = 's32[2]{0}', space=sflag, size = 0x8, scoped, tag = 'scoped memory for tpu_custom_call.1']
    #allocation5 [shape = 'u8[16384]{0}', space=vmem, size = 0x4000, scoped, tag = 'input window, operand 3, single buffered']
    #allocation6 [shape = 's32[1]{0}', space=sflag, size = 0x4, scoped, tag = 'scoped memory for tpu_custom_call.1']
    #allocation7 [shape = 'u8[4096]{0}', space=vmem, size = 0x1000, scoped, tag = 'output window, operand 0']
    %18 = vsyncpa [#allocation3], 0
    %19 = vsyncpa [#allocation6], 0
    %20 = vsyncpa [#allocation4], 0
    %s21 = scalar_lea.sflag [#allocation4], 1
    %22 = vsyncpa %s21, 0
    loop: start=0, step=1, limit=4
    $region2: #{tpu_custom_call.1} parent=1 // loop_pre_header
      _
    $region3: #{tpu_custom_call.1} parent=1 // loop_header
      %s24 = sphi 0, %s28
      %p25 = scmp.ge.s32.totalorder %s24, 4
      %s34 = sphi 0, %s36
      %s37 = sphi 0, %s34
      %s38 = sphi 0, %s37
      %s54 = sphi 0, %s38
      %s60 = sphi 0, %s62
      %s63 = sphi 0, %s60
      %s64 = sphi 0, %s63
      %s80 = sphi 0, %s64
      %s84 = sphi 0, %s84
      %s86 = sphi 0, %s84
      %s87 = sphi 0, %s86
      %s101 = sphi 0, %s87
      %s105 = sphi 0, %s105
      %s107 = sphi 0, %s105
      %s108 = sphi 0, %s107
      %s122 = sphi 0, %s108
      %s126 = sphi 0, %s126
      %s128 = sphi 0, %s126
      %s129 = sphi 0, %s128
      %s143 = sphi 0, %s129
      %s147 = sphi 0, %s147
      %s149 = sphi 0, %s147
      %s150 = sphi 0, %s149
      %s164 = sphi 0, %s150
      %s168 = sphi 0, %s168
      %s170 = sphi 0, %s168
      %s171 = sphi 0, %s170
      %s185 = sphi 0, %s171
      %s189 = sphi 0, %s189
      %s191 = sphi 0, %s189
      %s192 = sphi 0, %s191
      %s206 = sphi 0, %s192
      %s210 = sphi 0, %s210
      %s212 = sphi 0, %s210
      %s213 = sphi 0, %s212
      %s227 = sphi 0, %s213
      %s231 = sphi 0, %s231
      %s233 = sphi 0, %s231
      %s234 = sphi 0, %s233
      %s248 = sphi 0, %s234
      %s252 = sphi 0, %s252
      %s254 = sphi 0, %s252
      %s255 = sphi 0, %s254
      %s269 = sphi 0, %s255
      %s273 = sphi 0, %s273
      %s275 = sphi 0, %s273
      %s276 = sphi 0, %s275
      %s290 = sphi 0, %s276
      %s294 = sphi 0, %s294
      %s296 = sphi 0, %s294
      %s297 = sphi 0, %s296
      %s311 = sphi 0, %s297
      %s317 = sphi 0, %s319
      %s320 = sphi 0, %s317
      %s321 = sphi 0, %s320
      %s337 = sphi 0, %s321
    $region4: #{tpu_custom_call.1} parent=1 // loop_header_branch
      %27 = sbr.rel (%p25) target = $region8
    $region5: #{tpu_custom_call.1} parent=1 // loop_body
      %s29 = ssub.s32 %s24, 1
      %s30 = ssub.s32 %s24, 2
      %s31 = sadd.s32 %s24, 1
      %s32 = ssub.s32 %s24, %s31
      %p33 = scmp.eq.s32.totalorder %s32, 0
      %s35 = sadd.s32 %s34, 1
      %s36 = scalar_select %p33, %s34, %s35
      %p39 = pneg %p33
      %p40 = scmp.eq.s32.totalorder %s24, 1
      %p41 = por %p39, %p40
      %p42 = scmp.ne.s32.totalorder %s34, %s37
      %p43 = scmp.eq.s32.totalorder %s24, 0
      %p44 = por %p42, %p43
      %p45 = scmp.ne.s32.totalorder %s34, %s37
      %p46 = scmp.eq.s32.totalorder %s29, 1
      %p47 = por %p45, %p46
      %p48 = scmp.ne.s32.totalorder %s37, %s38
      %p49 = scmp.eq.s32.totalorder %s29, 0
      %p50 = por %p48, %p49
      %p51 = scmp.ne.s32.totalorder %s37, %s38
      %p52 = scmp.eq.s32.totalorder %s30, 1
      %p53 = por %p51, %p52
      %p55 = scmp.ne.s32.totalorder %s38, %s54
      %p56 = scmp.eq.s32.totalorder %s30, 0
      %p57 = por %p55, %p56
      %s58 = ssub.s32 %s24, %s31
      %p59 = scmp.eq.s32.totalorder %s58, 0
      %s61 = sadd.s32 %s60, 1
      %s62 = scalar_select %p59, %s60, %s61
      %p65 = pneg %p59
      %p66 = scmp.eq.s32.totalorder %s24, 1
      %p67 = por %p65, %p66
      %p68 = scmp.ne.s32.totalorder %s60, %s63
      %p69 = scmp.eq.s32.totalorder %s24, 0
      %p70 = por %p68, %p69
      %p71 = scmp.ne.s32.totalorder %s60, %s63
      %p72 = scmp.eq.s32.totalorder %s29, 1
      %p73 = por %p71, %p72
      %p74 = scmp.ne.s32.totalorder %s63, %s64
      %p75 = scmp.eq.s32.totalorder %s29, 0
      %p76 = por %p74, %p75
      %p77 = scmp.ne.s32.totalorder %s63, %s64
      %p78 = scmp.eq.s32.totalorder %s30, 1
      %p79 = por %p77, %p78
      %p81 = scmp.ne.s32.totalorder %s64, %s80
      %p82 = scmp.eq.s32.totalorder %s30, 0
      %p83 = por %p81, %p82
      %s85 = sadd.s32 %s84, 1
      %p88 = scmp.eq.s32.totalorder %s24, 1
      %p89 = scmp.ne.s32.totalorder %s84, %s86
      %p90 = scmp.eq.s32.totalorder %s24, 0
      %p91 = por %p89, %p90
      %p92 = scmp.ne.s32.totalorder %s84, %s86
      %p93 = scmp.eq.s32.totalorder %s29, 1
      %p94 = por %p92, %p93
      %p95 = scmp.ne.s32.totalorder %s86, %s87
      %p96 = scmp.eq.s32.totalorder %s29, 0
      %p97 = por %p95, %p96
      %p98 = scmp.ne.s32.totalorder %s86, %s87
      %p99 = scmp.eq.s32.totalorder %s30, 1
      %p100 = por %p98, %p99
      %p102 = scmp.ne.s32.totalorder %s87, %s101
      %p103 = scmp.eq.s32.totalorder %s30, 0
      %p104 = por %p102, %p103
      %s106 = sadd.s32 %s105, 1
      %p109 = scmp.eq.s32.totalorder %s24, 1
      %p110 = scmp.ne.s32.totalorder %s105, %s107
      %p111 = scmp.eq.s32.totalorder %s24, 0
      %p112 = por %p110, %p111
      %p113 = scmp.ne.s32.totalorder %s105, %s107
      %p114 = scmp.eq.s32.totalorder %s29, 1
      %p115 = por %p113, %p114
      %p116 = scmp.ne.s32.totalorder %s107, %s108
      %p117 = scmp.eq.s32.totalorder %s29, 0
      %p118 = por %p116, %p117
      %p119 = scmp.ne.s32.totalorder %s107, %s108
      %p120 = scmp.eq.s32.totalorder %s30, 1
      %p121 = por %p119, %p120
      %p123 = scmp.ne.s32.totalorder %s108, %s122
      %p124 = scmp.eq.s32.totalorder %s30, 0
      %p125 = por %p123, %p124
      %s127 = sadd.s32 %s126, 1
      %p130 = scmp.eq.s32.totalorder %s24, 1
      %p131 = scmp.ne.s32.totalorder %s126, %s128
      %p132 = scmp.eq.s32.totalorder %s24, 0
      %p133 = por %p131, %p132
      %p134 = scmp.ne.s32.totalorder %s126, %s128
      %p135 = scmp.eq.s32.totalorder %s29, 1
      %p136 = por %p134, %p135
      %p137 = scmp.ne.s32.totalorder %s128, %s129
      %p138 = scmp.eq.s32.totalorder %s29, 0
      %p139 = por %p137, %p138
      %p140 = scmp.ne.s32.totalorder %s128, %s129
      %p141 = scmp.eq.s32.totalorder %s30, 1
      %p142 = por %p140, %p141
      %p144 = scmp.ne.s32.totalorder %s129, %s143
      %p145 = scmp.eq.s32.totalorder %s30, 0
      %p146 = por %p144, %p145
      %s148 = sadd.s32 %s147, 1
      %p151 = scmp.eq.s32.totalorder %s24, 1
      %p152 = scmp.ne.s32.totalorder %s147, %s149
      %p153 = scmp.eq.s32.totalorder %s24, 0
      %p154 = por %p152, %p153
      %p155 = scmp.ne.s32.totalorder %s147, %s149
      %p156 = scmp.eq.s32.totalorder %s29, 1
      %p157 = por %p155, %p156
      %p158 = scmp.ne.s32.totalorder %s149, %s150
      %p159 = scmp.eq.s32.totalorder %s29, 0
      %p160 = por %p158, %p159
      %p161 = scmp.ne.s32.totalorder %s149, %s150
      %p162 = scmp.eq.s32.totalorder %s30, 1
      %p163 = por %p161, %p162
      %p165 = scmp.ne.s32.totalorder %s150, %s164
      %p166 = scmp.eq.s32.totalorder %s30, 0
      %p167 = por %p165, %p166
      %s169 = sadd.s32 %s168, 1
      %p172 = scmp.eq.s32.totalorder %s24, 1
      %p173 = scmp.ne.s32.totalorder %s168, %s170
      %p174 = scmp.eq.s32.totalorder %s24, 0
      %p175 = por %p173, %p174
      %p176 = scmp.ne.s32.totalorder %s168, %s170
      %p177 = scmp.eq.s32.totalorder %s29, 1
      %p178 = por %p176, %p177
      %p179 = scmp.ne.s32.totalorder %s170, %s171
      %p180 = scmp.eq.s32.totalorder %s29, 0
      %p181 = por %p179, %p180
      %p182 = scmp.ne.s32.totalorder %s170, %s171
      %p183 = scmp.eq.s32.totalorder %s30, 1
      %p184 = por %p182, %p183
      %p186 = scmp.ne.s32.totalorder %s171, %s185
      %p187 = scmp.eq.s32.totalorder %s30, 0
      %p188 = por %p186, %p187
      %s190 = sadd.s32 %s189, 1
      %p193 = scmp.eq.s32.totalorder %s24, 1
      %p194 = scmp.ne.s32.totalorder %s189, %s191
      %p195 = scmp.eq.s32.totalorder %s24, 0
      %p196 = por %p194, %p195
      %p197 = scmp.ne.s32.totalorder %s189, %s191
      %p198 = scmp.eq.s32.totalorder %s29, 1
      %p199 = por %p197, %p198
      %p200 = scmp.ne.s32.totalorder %s191, %s192
      %p201 = scmp.eq.s32.totalorder %s29, 0
      %p202 = por %p200, %p201
      %p203 = scmp.ne.s32.totalorder %s191, %s192
      %p204 = scmp.eq.s32.totalorder %s30, 1
      %p205 = por %p203, %p204
      %p207 = scmp.ne.s32.totalorder %s192, %s206
      %p208 = scmp.eq.s32.totalorder %s30, 0
      %p209 = por %p207, %p208
      %s211 = sadd.s32 %s210, 1
      %p214 = scmp.eq.s32.totalorder %s24, 1
      %p215 = scmp.ne.s32.totalorder %s210, %s212
      %p216 = scmp.eq.s32.totalorder %s24, 0
      %p217 = por %p215, %p216
      %p218 = scmp.ne.s32.totalorder %s210, %s212
      %p219 = scmp.eq.s32.totalorder %s29, 1
      %p220 = por %p218, %p219
      %p221 = scmp.ne.s32.totalorder %s212, %s213
      %p222 = scmp.eq.s32.totalorder %s29, 0
      %p223 = por %p221, %p222
      %p224 = scmp.ne.s32.totalorder %s212, %s213
      %p225 = scmp.eq.s32.totalorder %s30, 1
      %p226 = por %p224, %p225
      %p228 = scmp.ne.s32.totalorder %s213, %s227
      %p229 = scmp.eq.s32.totalorder %s30, 0
      %p230 = por %p228, %p229
      %s232 = sadd.s32 %s231, 1
      %p235 = scmp.eq.s32.totalorder %s24, 1
      %p236 = scmp.ne.s32.totalorder %s231, %s233
      %p237 = scmp.eq.s32.totalorder %s24, 0
      %p238 = por %p236, %p237
      %p239 = scmp.ne.s32.totalorder %s231, %s233
      %p240 = scmp.eq.s32.totalorder %s29, 1
      %p241 = por %p239, %p240
      %p242 = scmp.ne.s32.totalorder %s233, %s234
      %p243 = scmp.eq.s32.totalorder %s29, 0
      %p244 = por %p242, %p243
      %p245 = scmp.ne.s32.totalorder %s233, %s234
      %p246 = scmp.eq.s32.totalorder %s30, 1
      %p247 = por %p245, %p246
      %p249 = scmp.ne.s32.totalorder %s234, %s248
      %p250 = scmp.eq.s32.totalorder %s30, 0
      %p251 = por %p249, %p250
      %s253 = sadd.s32 %s252, 1
      %p256 = scmp.eq.s32.totalorder %s24, 1
      %p257 = scmp.ne.s32.totalorder %s252, %s254
      %p258 = scmp.eq.s32.totalorder %s24, 0
      %p259 = por %p257, %p258
      %p260 = scmp.ne.s32.totalorder %s252, %s254
      %p261 = scmp.eq.s32.totalorder %s29, 1
      %p262 = por %p260, %p261
      %p263 = scmp.ne.s32.totalorder %s254, %s255
      %p264 = scmp.eq.s32.totalorder %s29, 0
      %p265 = por %p263, %p264
      %p266 = scmp.ne.s32.totalorder %s254, %s255
      %p267 = scmp.eq.s32.totalorder %s30, 1
      %p268 = por %p266, %p267
      %p270 = scmp.ne.s32.totalorder %s255, %s269
      %p271 = scmp.eq.s32.totalorder %s30, 0
      %p272 = por %p270, %p271
      %s274 = sadd.s32 %s273, 1
      %p277 = scmp.eq.s32.totalorder %s24, 1
      %p278 = scmp.ne.s32.totalorder %s273, %s275
      %p279 = scmp.eq.s32.totalorder %s24, 0
      %p280 = por %p278, %p279
      %p281 = scmp.ne.s32.totalorder %s273, %s275
      %p282 = scmp.eq.s32.totalorder %s29, 1
      %p283 = por %p281, %p282
      %p284 = scmp.ne.s32.totalorder %s275, %s276
      %p285 = scmp.eq.s32.totalorder %s29, 0
      %p286 = por %p284, %p285
      %p287 = scmp.ne.s32.totalorder %s275, %s276
      %p288 = scmp.eq.s32.totalorder %s30, 1
      %p289 = por %p287, %p288
      %p291 = scmp.ne.s32.totalorder %s276, %s290
      %p292 = scmp.eq.s32.totalorder %s30, 0
      %p293 = por %p291, %p292
      %s295 = sadd.s32 %s294, 1
      %p298 = scmp.eq.s32.totalorder %s24, 1
      %p299 = scmp.ne.s32.totalorder %s294, %s296
      %p300 = scmp.eq.s32.totalorder %s24, 0
      %p301 = por %p299, %p300
      %p302 = scmp.ne.s32.totalorder %s294, %s296
      %p303 = scmp.eq.s32.totalorder %s29, 1
      %p304 = por %p302, %p303
      %p305 = scmp.ne.s32.totalorder %s296, %s297
      %p306 = scmp.eq.s32.totalorder %s29, 0
      %p307 = por %p305, %p306
      %p308 = scmp.ne.s32.totalorder %s296, %s297
      %p309 = scmp.eq.s32.totalorder %s30, 1
      %p310 = por %p308, %p309
      %p312 = scmp.ne.s32.totalorder %s297, %s311
      %p313 = scmp.eq.s32.totalorder %s30, 0
      %p314 = por %p312, %p313
      %s315 = ssub.s32 %s24, %s31
      %p316 = scmp.eq.s32.totalorder %s315, 0
      %s318 = sadd.s32 %s317, 1
      %s319 = scalar_select %p316, %s317, %s318
      %p322 = pneg %p316
      %p323 = scmp.eq.s32.totalorder %s24, 1
      %p324 = por %p322, %p323
      %p325 = scmp.ne.s32.totalorder %s317, %s320
      %p326 = scmp.eq.s32.totalorder %s24, 0
      %p327 = por %p325, %p326
      %p328 = scmp.ne.s32.totalorder %s317, %s320
      %p329 = scmp.eq.s32.totalorder %s29, 1
      %p330 = por %p328, %p329
      %p331 = scmp.ne.s32.totalorder %s320, %s321
      %p332 = scmp.eq.s32.totalorder %s29, 0
      %p333 = por %p331, %p332
      %p334 = scmp.ne.s32.totalorder %s320, %s321
      %p335 = scmp.eq.s32.totalorder %s30, 1
      %p336 = por %p334, %p335
      %p338 = scmp.ne.s32.totalorder %s321, %s337
      %p339 = scmp.eq.s32.totalorder %s30, 0
      %p340 = por %p338, %p339
      %p341 = scmp.le.s32.totalorder 1, %s24
      %p342 = scmp.lt.s32.totalorder %s24, 3
      %p343 = pnand %p341, %p342
      %p344 = pneg %p343
      // Predicated region
      $region9: #{tpu_custom_call.1} parent=5 // pred_check
        _
      $region10: #{tpu_custom_call.1} parent=5 // pred_check_branch
        %346 = sbr.rel (%p343) target = $region12
      $region11: #{tpu_custom_call.1} parent=5 // pred_region
        %s347 = ssub.s32 %s24, 1
        // Predicated region
        $region13: #{tpu_custom_call.1} parent=11 // pred_check
          %p348 = pneg %p97
        $region14: #{tpu_custom_call.1} parent=11 // pred_check_branch
          %350 = sbr.rel (%p348) target = $region16
        $region15: #{tpu_custom_call.1} parent=11 // pred_region
          %s352 = ssub.s32 2048, 2048
          %353 = vsyncadd [#allocation3], %s352
          %s354 = sshll.u32 [#allocation2], 4
          %s355 = int_to_ptr.vmem [resolvable:$true] %s354
          %360 = dma.hbm_to_vmem [thread:$0]  %s2, 2048, %s355, [#allocation3], 256, 256, 16
        $region16: #{tpu_custom_call.1} parent=11 // pred_fallthru
          _
        // Predicated region
        $region17: #{tpu_custom_call.1} parent=11 // pred_check
          %p361 = pneg %p118
        $region18: #{tpu_custom_call.1} parent=11 // pred_check_branch
          %363 = sbr.rel (%p361) target = $region20
        $region19: #{tpu_custom_call.1} parent=11 // pred_region
          %s365 = ssub.s32 512, 512
          %366 = vsyncadd [#allocation6], %s365
          %s367 = sshll.u32 [#allocation5], 4
          %s368 = int_to_ptr.vmem [resolvable:$true] %s367
          %373 = dma.hbm_to_vmem [thread:$0]  %s3, 512, %s368, [#allocation6], 256, 256, 16
        $region20: #{tpu_custom_call.1} parent=11 // pred_fallthru
          _
        // Predicated region
        $region21: #{tpu_custom_call.1} parent=11 // pred_check
          %p374 = pneg %p139
        $region22: #{tpu_custom_call.1} parent=11 // pred_check_branch
          %376 = sbr.rel (%p374) target = $region24
        $region23: #{tpu_custom_call.1} parent=11 // pred_region
          _
        $region24: #{tpu_custom_call.1} parent=11 // pred_fallthru
          _
        // Predicated region
        $region25: #{tpu_custom_call.1} parent=11 // pred_check
          %p377 = pneg %p160
        $region26: #{tpu_custom_call.1} parent=11 // pred_check_branch
          %379 = sbr.rel (%p377) target = $region28
        $region27: #{tpu_custom_call.1} parent=11 // pred_region
          _
        $region28: #{tpu_custom_call.1} parent=11 // pred_fallthru
          _
        // Predicated region
        $region29: #{tpu_custom_call.1} parent=11 // pred_check
          %p380 = pneg %p181
        $region30: #{tpu_custom_call.1} parent=11 // pred_check_branch
          %382 = sbr.rel (%p380) target = $region32
        $region31: #{tpu_custom_call.1} parent=11 // pred_region
          _
        $region32: #{tpu_custom_call.1} parent=11 // pred_fallthru
          _
        // Predicated region
        $region33: #{tpu_custom_call.1} parent=11 // pred_check
          %p383 = pneg %p202
        $region34: #{tpu_custom_call.1} parent=11 // pred_check_branch
          %385 = sbr.rel (%p383) target = $region36
        $region35: #{tpu_custom_call.1} parent=11 // pred_region
          _
        $region36: #{tpu_custom_call.1} parent=11 // pred_fallthru
          _
        // Predicated region
        $region37: #{tpu_custom_call.1} parent=11 // pred_check
          %p386 = pneg %p223
        $region38: #{tpu_custom_call.1} parent=11 // pred_check_branch
          %388 = sbr.rel (%p386) target = $region40
        $region39: #{tpu_custom_call.1} parent=11 // pred_region
          _
        $region40: #{tpu_custom_call.1} parent=11 // pred_fallthru
          _
        // Predicated region
        $region41: #{tpu_custom_call.1} parent=11 // pred_check
          %p389 = pneg %p244
        $region42: #{tpu_custom_call.1} parent=11 // pred_check_branch
          %391 = sbr.rel (%p389) target = $region44
        $region43: #{tpu_custom_call.1} parent=11 // pred_region
          _
        $region44: #{tpu_custom_call.1} parent=11 // pred_fallthru
          _
        // Predicated region
        $region45: #{tpu_custom_call.1} parent=11 // pred_check
          %p392 = pneg %p265
        $region46: #{tpu_custom_call.1} parent=11 // pred_check_branch
          %394 = sbr.rel (%p392) target = $region48
        $region47: #{tpu_custom_call.1} parent=11 // pred_region
          _
        $region48: #{tpu_custom_call.1} parent=11 // pred_fallthru
          _
        // Predicated region
        $region49: #{tpu_custom_call.1} parent=11 // pred_check
          %p395 = pneg %p286
        $region50: #{tpu_custom_call.1} parent=11 // pred_check_branch
          %397 = sbr.rel (%p395) target = $region52
        $region51: #{tpu_custom_call.1} parent=11 // pred_region
          _
        $region52: #{tpu_custom_call.1} parent=11 // pred_fallthru
          _
        // Predicated region
        $region53: #{tpu_custom_call.1} parent=11 // pred_check
          %p398 = pneg %p307
        $region54: #{tpu_custom_call.1} parent=11 // pred_check_branch
          %400 = sbr.rel (%p398) target = $region56
        $region55: #{tpu_custom_call.1} parent=11 // pred_region
          _
        $region56: #{tpu_custom_call.1} parent=11 // pred_fallthru
          _
      $region12: #{tpu_custom_call.1} parent=5 // pred_fallthru
        _
      %p401 = scmp.lt.s32.totalorder %s24, 2
      // Predicated region
      $region57: #{tpu_custom_call.1} parent=5 // pred_check
        %p402 = pneg %p401
      $region58: #{tpu_custom_call.1} parent=5 // pred_check_branch
        %404 = sbr.rel (%p402) target = $region60
      $region59: #{tpu_custom_call.1} parent=5 // pred_region
        // Predicated region
        $region61: #{tpu_custom_call.1} parent=59 // pred_check
          %p405 = pneg %p44
        $region62: #{tpu_custom_call.1} parent=59 // pred_check_branch
          %407 = sbr.rel (%p405) target = $region64
        $region63: #{tpu_custom_call.1} parent=59 // pred_region
          %p408 = scmp.lt.s32.totalorder %s24, 1
          %s409 = scalar_select %p408, %s24, 1
          %s410 = smul.addr %s409, 4
          %s411 = scalar_lea.vmem %s0, %s410
        $region64: #{tpu_custom_call.1} parent=59 // pred_fallthru
          _
        // Predicated region
        $region65: #{tpu_custom_call.1} parent=59 // pred_check
          %p412 = pneg %p70
        $region66: #{tpu_custom_call.1} parent=59 // pred_check_branch
          %414 = sbr.rel (%p412) target = $region68
        $region67: #{tpu_custom_call.1} parent=59 // pred_region
          %p415 = scmp.lt.s32.totalorder %s24, 1
          %s416 = scalar_select %p415, %s24, 1
          %s417 = smul.addr %s416, 2
          %s418 = smul.addr %s417, 2
          %s419 = scalar_lea.vmem %s1, %s418
        $region68: #{tpu_custom_call.1} parent=59 // pred_fallthru
          _
      $region60: #{tpu_custom_call.1} parent=5 // pred_fallthru
        _
      %p420 = scmp.le.s32.totalorder 1, %s24
      %p421 = scmp.lt.s32.totalorder %s24, 3
      %p422 = pnand %p420, %p421
      %p423 = pneg %p422
      // Predicated region
      $region69: #{tpu_custom_call.1} parent=5 // pred_check
        _
      $region70: #{tpu_custom_call.1} parent=5 // pred_check_branch
        %425 = sbr.rel (%p422) target = $region72
      $region71: #{tpu_custom_call.1} parent=5 // pred_region
        %s426 = ssub.s32 %s24, 1
        // Predicated region
        $region73: #{tpu_custom_call.1} parent=71 // pred_check
          %p427 = pneg %p97
        $region74: #{tpu_custom_call.1} parent=71 // pred_check_branch
          %429 = sbr.rel (%p427) target = $region76
        $region75: #{tpu_custom_call.1} parent=71 // pred_region
          %430 = dma.done [#allocation3], 2048
        $region76: #{tpu_custom_call.1} parent=71 // pred_fallthru
          _
        // Predicated region
        $region77: #{tpu_custom_call.1} parent=71 // pred_check
          %p431 = pneg %p118
        $region78: #{tpu_custom_call.1} parent=71 // pred_check_branch
          %433 = sbr.rel (%p431) target = $region80
        $region79: #{tpu_custom_call.1} parent=71 // pred_region
          %434 = dma.done [#allocation6], 512
        $region80: #{tpu_custom_call.1} parent=71 // pred_fallthru
          _
        %p435 = scmp.lt.s32.totalorder %s29, 1
        %s436 = scalar_select %p435, %s29, 1
        %s437 = smul.addr %s436, 4
        %s438 = scalar_lea.vmem %s0, %s437
        %p439 = pneg %p50
        %p440 = pneg %p47
        %p441 = scmp.lt.s32.totalorder %s29, 1
        %s442 = scalar_select %p441, %s29, 1
        %s443 = smul.addr %s442, 2
        %s444 = smul.addr %s443, 2
        %s445 = scalar_lea.vmem %s1, %s444
        %p446 = pneg %p76
        %p447 = pneg %p73
        %p448 = pneg %p97
        %p449 = pneg %p94
        %p450 = pneg %p118
        %p451 = pneg %p115
        %p452 = pneg %p139
        %p453 = pneg %p136
        %p454 = pneg %p160
        %p455 = pneg %p157
        %p456 = pneg %p181
        %p457 = pneg %p178
        %p458 = pneg %p202
        %p459 = pneg %p199
        %p460 = pneg %p223
        %p461 = pneg %p220
        %p462 = pneg %p244
        %p463 = pneg %p241
        %p464 = pneg %p265
        %p465 = pneg %p262
        %p466 = pneg %p286
        %p467 = pneg %p283
        %p468 = pneg %p307
        %p469 = pneg %p304
        %p470 = pneg %p333
        %p471 = pneg %p330
        %s472 = sand.u32 %s320, 1
        %s473 = scalar_lea.sflag [#allocation4], %s472
        %s474 = sand.u32 %s320, 1
        %s475 = smul.addr %s474, 4
        %s476 = scalar_lea.vmem [#allocation7], %s475
        %p477 = scmp.lt.s32.totalorder %s29, 1
        %s478 = scalar_select %p477, %s29, 1
        %s479 = smul.addr %s478, 4
        %s480 = scalar_lea.vmem %s0, %s479
        %p481 = scmp.lt.s32.totalorder %s29, 1
        %s482 = scalar_select %p481, %s29, 1
        %s483 = smul.addr %s482, 2
        %s484 = smul.addr %s483, 2
        %s485 = scalar_lea.vmem %s1, %s484
        %v486 = vld [vmem:[#allocation5] sm:$0xff]
        %v487 = vld [vmem:[#allocation5 + $0x8] sm:$0xff]
        %v488 = vld [vmem:[#allocation5 + $0x10] sm:$0x1]
        %v489 = vld [vmem:[#allocation5 + $0x18] sm:$0x1]
        %v490 = vld [vmem:[%s480] sm:$0xf]
        %v491 = vld [vmem:[%s4] sm:$0x3]
        %vm492 = vcmask 31744
        %v494 = vsel %vm492, %v491, 0
        %vm496 = vcmask 1043456
        %v498 = vsel %vm496, %v490, 0
        %500 = vmatprep.subr.mxu0 0.0
        %501 = vmatpush1.msra.mxu0 0.0
        %502 = vmatprep.subr.mxu0 0.0
        %503 = vmatpush1.msra.mxu0 0.0
        %504 = vmatprep.subr.mxu0 0.0
        %505 = vmatpush1.msra.mxu0 0.0
        %506 = vmatprep.subr.mxu0 0.0
        %507 = vmatpush1.msra.mxu0 0.0
        %508 = vmatprep.subr.mxu0 0.0
        %509 = vmatpush1.msra.mxu0 0.0
        %510 = vmatprep.subr.mxu0 0.0
        %511 = vmatpush1.msra.mxu0 0.0
        %512 = vmatprep.subr.mxu0 0.0
        %513 = vmatpush1.msra.mxu0 0.0
        %514 = vmatprep.subr.mxu0 0.0
        %515 = vmatpush1.msra.mxu0 0.0
        %516 = vmatprep.subr.mxu0 0.0
        %517 = vmatpush1.msra.mxu0 0.0
        %518 = vmatprep.subr.mxu0 0.0
        %519 = vmatpush1.msra.mxu0 0.0
        %520 = vmatprep.subr.mxu0 0.0
        %521 = vmatpush1.msra.mxu0 0.0
        %522 = vmatprep.subr.mxu0 0.0
        %523 = vmatpush1.msra.mxu0 0.0
        %524 = vmatprep.subr.mxu0 0.0
        %525 = vmatpush1.msra.mxu0 0.0
        %526 = vmatprep.subr.mxu0 0.0
        %527 = vmatpush1.msra.mxu0 0.0
        %528 = vmatprep.subr.mxu0 0.0
        %529 = vmatpush1.msra.mxu0 0.0
        %530 = vmatprep.subr.mxu0 0.0
        %531 = vmatpush1.msra.mxu0 %v498
        %532 = vmatprep.subr.mxu0 0.0
        %533 = vmatpush2.msra.mxu0 0.0
        %534 = vmatprep.subr.mxu0 0.0
        %535 = vmatpush2.msra.mxu0 0.0
        %536 = vmatprep.subr.mxu0 0.0
        %537 = vmatpush2.msra.mxu0 0.0
        %538 = vmatprep.subr.mxu0 0.0
        %539 = vmatpush2.msra.mxu0 0.0
        %540 = vmatprep.subr.mxu0 0.0
        %541 = vmatpush2.msra.mxu0 0.0
        %542 = vmatprep.subr.mxu0 0.0
        %543 = vmatpush2.msra.mxu0 0.0
        %544 = vmatprep.subr.mxu0 0.0
        %545 = vmatpush2.msra.mxu0 0.0
        %546 = vmatprep.subr.mxu0 0.0
        %547 = vmatpush2.msra.mxu0 0.0
        %548 = vmatprep.subr.mxu0 0.0
        %549 = vmatpush2.msra.mxu0 0.0
        %550 = vmatprep.subr.mxu0 0.0
        %551 = vmatpush2.msra.mxu0 0.0
        %552 = vmatprep.subr.mxu0 0.0
        %553 = vmatpush2.msra.mxu0 0.0
        %554 = vmatprep.subr.mxu0 0.0
        %555 = vmatpush2.msra.mxu0 0.0
        %556 = vmatprep.subr.mxu0 0.0
        %557 = vmatpush2.msra.mxu0 0.0
        %558 = vmatprep.subr.mxu0 0.0
        %559 = vmatpush2.msra.mxu0 0.0
        %560 = vmatprep.subr.mxu0 0.0
        %561 = vmatpush2.msra.mxu0 0.0
        %562 = vmatprep.subr.mxu0 0.0
        %563 = vmatpush2.msra.mxu0 0.0
        %564 = vmatprep.mubr.f32.mxu0 0.0
        %565 = vmatmul.mubr.f32.gmra.mxu0 %v494
        %v566 = vpop.f32.mrf.mxu0
        %v567 = vadd.f32 0.0, %v566
        %v568 = vpop.f32.mrf.mxu0
        %569 = vdwg.mxu0
        %v570 = vld [vmem:[#allocation2] sm:$0xff]
        %v571 = vld [vmem:[#allocation2 + $0x8] sm:$0xff]
        %v572 = vld [vmem:[#allocation2 + $0x10] sm:$0xff]
        %v573 = vld [vmem:[#allocation2 + $0x18] sm:$0xff]
        %v574 = vld [vmem:[#allocation2 + $0x20] sm:$0xff]
        %v575 = vld [vmem:[#allocation2 + $0x28] sm:$0xff]
        %v576 = vld [vmem:[#allocation2 + $0x30] sm:$0xff]
        %v577 = vld [vmem:[#allocation2 + $0x38] sm:$0xff]
        %v578 = vld [vmem:[#allocation2 + $0x40] sm:$0xff]
        %v579 = vld [vmem:[#allocation2 + $0x48] sm:$0xff]
        %v580 = vld [vmem:[#allocation2 + $0x50] sm:$0xff]
        %v581 = vld [vmem:[#allocation2 + $0x58] sm:$0xff]
        %v582 = vld [vmem:[#allocation2 + $0x60] sm:$0xff]
        %v583 = vld [vmem:[#allocation2 + $0x68] sm:$0xff]
        %v584 = vld [vmem:[#allocation2 + $0x70] sm:$0xff]
        %v585 = vld [vmem:[#allocation2 + $0x78] sm:$0xff]
        %v586 = vld [vmem:[%s5] sm:$0x3]
        %588 = vset.pattern.permute.xlu0 0
        %589 = vperm.xlu0 %588, %v586
        %v590 = vpop.permute.xlu0 %589
        %vm592 = vcmask 523264
        %v594 = vsel %vm592, %v567, 0
        %596 = vmatprep.subr.mxu0 0.0
        %597 = vmatpush1.msra.mxu0 0.0
        %598 = vmatprep.subr.mxu0 0.0
        %599 = vmatpush1.msra.mxu0 0.0
        %600 = vmatprep.subr.mxu0 0.0
        %601 = vmatpush1.msra.mxu0 0.0
        %602 = vmatprep.subr.mxu0 0.0
        %603 = vmatpush1.msra.mxu0 0.0
        %604 = vmatprep.subr.mxu0 0.0
        %605 = vmatpush1.msra.mxu0 0.0
        %606 = vmatprep.subr.mxu0 0.0
        %607 = vmatpush1.msra.mxu0 0.0
        %608 = vmatprep.subr.mxu0 0.0
        %609 = vmatpush1.msra.mxu0 0.0
        %610 = vmatprep.subr.mxu0 0.0
        %611 = vmatpush1.msra.mxu0 0.0
        %612 = vmatprep.subr.mxu0 %v585
        %613 = vmatpush1.msra.mxu0 %v584
        %614 = vmatprep.subr.mxu0 %v583
        %615 = vmatpush1.msra.mxu0 %v582
        %616 = vmatprep.subr.mxu0 %v581
        %617 = vmatpush1.msra.mxu0 %v580
        %618 = vmatprep.subr.mxu0 %v579
        %619 = vmatpush1.msra.mxu0 %v578
        %620 = vmatprep.subr.mxu0 %v577
        %621 = vmatpush1.msra.mxu0 %v576
        %622 = vmatprep.subr.mxu0 %v575
        %623 = vmatpush1.msra.mxu0 %v574
        %624 = vmatprep.subr.mxu0 %v573
        %625 = vmatpush1.msra.mxu0 %v572
        %626 = vmatprep.subr.mxu0 %v571
        %627 = vmatpush1.msra.mxu0 %v570
        %628 = vmatprep.subr.mxu0 0.0
        %629 = vmatpush2.msra.mxu0 0.0
        %630 = vmatprep.subr.mxu0 0.0
        %631 = vmatpush2.msra.mxu0 0.0
        %632 = vmatprep.subr.mxu0 0.0
        %633 = vmatpush2.msra.mxu0 0.0
        %634 = vmatprep.subr.mxu0 0.0
        %635 = vmatpush2.msra.mxu0 0.0
        %636 = vmatprep.subr.mxu0 0.0
        %637 = vmatpush2.msra.mxu0 0.0
        %638 = vmatprep.subr.mxu0 0.0
        %639 = vmatpush2.msra.mxu0 0.0
        %640 = vmatprep.subr.mxu0 0.0
        %641 = vmatpush2.msra.mxu0 0.0
        %642 = vmatprep.subr.mxu0 0.0
        %643 = vmatpush2.msra.mxu0 0.0
        %644 = vmatprep.subr.mxu0 0.0
        %645 = vmatpush2.msra.mxu0 0.0
        %646 = vmatprep.subr.mxu0 0.0
        %647 = vmatpush2.msra.mxu0 0.0
        %648 = vmatprep.subr.mxu0 0.0
        %649 = vmatpush2.msra.mxu0 0.0
        %650 = vmatprep.subr.mxu0 0.0
        %651 = vmatpush2.msra.mxu0 0.0
        %652 = vmatprep.subr.mxu0 0.0
        %653 = vmatpush2.msra.mxu0 0.0
        %654 = vmatprep.subr.mxu0 0.0
        %655 = vmatpush2.msra.mxu0 0.0
        %656 = vmatprep.subr.mxu0 0.0
        %657 = vmatpush2.msra.mxu0 0.0
        %658 = vmatprep.subr.mxu0 0.0
        %659 = vmatpush2.msra.mxu0 0.0
        %660 = vmatprep.mubr.f32.mxu0 0.0
        %661 = vmatmul.mubr.f32.gmra.mxu0 %v594
        %v662 = vpop.f32.mrf.mxu0
        %v663 = vadd.f32 %v590, %v662
        %v664 = vpop.f32.mrf.mxu0
        %v665 = vadd.f32 %v590, %v664
        %666 = vdwg.mxu0
        %v667 = vld [vmem:[%s6] sm:$0x3]
        %v668 = vld [vmem:[%s485] sm:$0xf]
        %v671 = vunpack.c.l.s4 1983009808
        %v672 = vunpack.c.0.s8 %v671
        %v673 = vlaneseq
        %v674 = vshrl.u32 %v673, 7
        %v675 = vsub.s32 %v672, %v674
        %v676 = vrot.slane %v668, %v675
        %v677 = vcombine.high %v676, %v676
        %680 = vrot.lane.b32.xlu0 %v676, 17
        %v681 = vpop.permute.xlu0 %680
        %682 = vrot.lane.b32.xlu0 %v677, 17
        %v683 = vpop.permute.xlu0 %682
        %v684 = vlaneseq
        %v685 = vand.u32 %v684, 127
        %vm686 = vcmp.lt.s32.totalorder %v685, 17
        %v687 = vsel %vm686, %v681, %v683
        %v688 = vsel %vm686, %v683, %v681
        %v689 = vlaneseq
        %v690 = vshrl.u32 %v689, 7
        %v691 = vsub.s32 0, %v690
        %v692 = vrot.slane %v486, %v691
        %v693 = vlaneseq
        %v694 = vshrl.u32 %v693, 7
        %v695 = vsub.s32 0, %v694
        %v696 = vrot.slane %v487, %v695
        %v697 = vmul.f32 %v688, %v692
        %v698 = vmul.f32 %v687, %v696
        %699 = vrot.lane.b32.xlu0 %v676, 16
        %v700 = vpop.permute.xlu0 %699
        %701 = vrot.lane.b32.xlu0 %v677, 16
        %v702 = vpop.permute.xlu0 %701
        %vm703 = vcmp.lt.s32.totalorder %v685, 16
        %v704 = vsel %vm703, %v700, %v702
        %v705 = vsel %vm703, %v702, %v700
        %v706 = vlaneseq
        %v707 = vshrl.u32 %v706, 7
        %v708 = vsub.s32 1, %v707
        %v709 = vrot.slane %v486, %v708
        %v710 = vlaneseq
        %v711 = vshrl.u32 %v710, 7
        %v712 = vsub.s32 1, %v711
        %v713 = vrot.slane %v487, %v712
        %v714 = vmul.f32 %v705, %v709
        %v715 = vmul.f32 %v704, %v713
        %716 = vrot.lane.b32.xlu0 %v676, 15
        %v717 = vpop.permute.xlu0 %716
        %718 = vrot.lane.b32.xlu0 %v677, 15
        %v719 = vpop.permute.xlu0 %718
        %vm720 = vcmp.lt.s32.totalorder %v685, 15
        %v721 = vsel %vm720, %v717, %v719
        %v722 = vsel %vm720, %v719, %v717
        %v723 = vlaneseq
        %v724 = vshrl.u32 %v723, 7
        %v725 = vsub.s32 2, %v724
        %v726 = vrot.slane %v486, %v725
        %v727 = vlaneseq
        %v728 = vshrl.u32 %v727, 7
        %v729 = vsub.s32 2, %v728
        %v730 = vrot.slane %v487, %v729
        %v731 = vmul.f32 %v722, %v726
        %v732 = vmul.f32 %v721, %v730
        %733 = vrot.lane.b32.xlu0 %v676, 1
        %v734 = vpop.permute.xlu0 %733
        %735 = vrot.lane.b32.xlu0 %v677, 1
        %v736 = vpop.permute.xlu0 %735
        %vm737 = vcmp.lt.s32.totalorder %v685, 1
        %v738 = vsel %vm737, %v734, %v736
        %v739 = vsel %vm737, %v736, %v734
        %v740 = vlaneseq
        %v741 = vshrl.u32 %v740, 7
        %v742 = vsub.s32 3, %v741
        %v743 = vrot.slane %v486, %v742
        %v744 = vlaneseq
        %v745 = vshrl.u32 %v744, 7
        %v746 = vsub.s32 3, %v745
        %v747 = vrot.slane %v487, %v746
        %v748 = vmul.f32 %v739, %v743
        %v749 = vmul.f32 %v738, %v747
        %750 = vrot.lane.b32.xlu0 %v676, 127
        %v751 = vpop.permute.xlu0 %750
        %752 = vrot.lane.b32.xlu0 %v677, 127
        %v753 = vpop.permute.xlu0 %752
        %vm754 = vcmp.lt.s32.totalorder %v685, 127
        %v755 = vsel %vm754, %v751, %v753
        %v756 = vsel %vm754, %v753, %v751
        %v757 = vlaneseq
        %v758 = vshrl.u32 %v757, 7
        %v759 = vsub.s32 5, %v758
        %v760 = vrot.slane %v486, %v759
        %v761 = vlaneseq
        %v762 = vshrl.u32 %v761, 7
        %v763 = vsub.s32 5, %v762
        %v764 = vrot.slane %v487, %v763
        %v765 = vmul.f32 %v755, %v760
        %v766 = vmul.f32 %v756, %v764
        %767 = vrot.lane.b32.xlu0 %v676, 113
        %v768 = vpop.permute.xlu0 %767
        %769 = vrot.lane.b32.xlu0 %v677, 113
        %v770 = vpop.permute.xlu0 %769
        %vm771 = vcmp.lt.s32.totalorder %v685, 113
        %v772 = vsel %vm771, %v768, %v770
        %v773 = vsel %vm771, %v770, %v768
        %v774 = vlaneseq
        %v775 = vshrl.u32 %v774, 7
        %v776 = vsub.s32 6, %v775
        %v777 = vrot.slane %v486, %v776
        %v778 = vlaneseq
        %v779 = vshrl.u32 %v778, 7
        %v780 = vsub.s32 6, %v779
        %v781 = vrot.slane %v487, %v780
        %v782 = vmul.f32 %v772, %v777
        %v783 = vmul.f32 %v773, %v781
        %784 = vrot.lane.b32.xlu0 %v676, 112
        %v785 = vpop.permute.xlu0 %784
        %786 = vrot.lane.b32.xlu0 %v677, 112
        %v787 = vpop.permute.xlu0 %786
        %vm788 = vcmp.lt.s32.totalorder %v685, 112
        %v789 = vsel %vm788, %v785, %v787
        %v790 = vsel %vm788, %v787, %v785
        %v791 = vlaneseq
        %v792 = vshrl.u32 %v791, 7
        %v793 = vsub.s32 7, %v792
        %v794 = vrot.slane %v486, %v793
        %v795 = vlaneseq
        %v796 = vshrl.u32 %v795, 7
        %v797 = vsub.s32 7, %v796
        %v798 = vrot.slane %v487, %v797
        %v799 = vmul.f32 %v789, %v794
        %v800 = vmul.f32 %v790, %v798
        %801 = vrot.lane.b32.xlu0 %v676, 111
        %v802 = vpop.permute.xlu0 %801
        %803 = vrot.lane.b32.xlu0 %v677, 111
        %v804 = vpop.permute.xlu0 %803
        %vm805 = vcmp.lt.s32.totalorder %v685, 111
        %v806 = vsel %vm805, %v802, %v804
        %v807 = vsel %vm805, %v804, %v802
        %v808 = vlaneseq
        %v809 = vshrl.u32 %v808, 7
        %v810 = vsub.s32 0, %v809
        %v811 = vrot.slane %v488, %v810
        %v812 = vlaneseq
        %v813 = vshrl.u32 %v812, 7
        %v814 = vsub.s32 0, %v813
        %v815 = vrot.slane %v489, %v814
        %v816 = vmul.f32 %v806, %v811
        %v817 = vmul.f32 %v807, %v815
        %v820 = vrot.slane %v714, 6
        %v821 = vrot.slane %v715, 6
        %v826 = vrot.slane %v731, 4
        %v827 = vrot.slane %v732, 4
        %v832 = vrot.slane %v748, 2
        %v833 = vrot.slane %v749, 2
        %v838 = vrot.slane %v765, 6
        %v839 = vrot.slane %v766, 6
        %v844 = vrot.slane %v782, 4
        %v845 = vrot.slane %v783, 4
        %v850 = vrot.slane %v799, 2
        %v851 = vrot.slane %v800, 2
        %vm854 = vcmask 1041408
        %v855 = vsel %vm854, %v697, %v820
        %v856 = vsel %vm854, %v698, %v821
        %v857 = vsel %vm496, %v855, %v826
        %v858 = vsel %vm496, %v856, %v827
        %vm859 = vcmask 1045504
        %v860 = vsel %vm859, %v857, %v832
        %v861 = vsel %vm859, %v858, %v833
        %v862 = vsel %vm854, %v676, %v838
        %v863 = vsel %vm854, %v677, %v839
        %v864 = vsel %vm496, %v862, %v844
        %v865 = vsel %vm496, %v863, %v845
        %v866 = vsel %vm859, %v864, %v850
        %v867 = vsel %vm859, %v865, %v851
        %v868 = vld [vmem:[%s7] sm:$0x3]
        %869 = vrot.lane.b32.xlu0 %v663, 17
        %v870 = vpop.permute.xlu0 %869
        %871 = vrot.lane.b32.xlu0 %v665, 17
        %v872 = vpop.permute.xlu0 %871
        %v873 = vsel %vm686, %v870, %v872
        %v874 = vsel %vm686, %v872, %v870
        %v875 = vmul.f32 %v874, %v692
        %v876 = vmul.f32 %v873, %v696
        %877 = vrot.lane.b32.xlu0 %v663, 16
        %v878 = vpop.permute.xlu0 %877
        %879 = vrot.lane.b32.xlu0 %v665, 16
        %v880 = vpop.permute.xlu0 %879
        %v881 = vsel %vm703, %v878, %v880
        %v882 = vsel %vm703, %v880, %v878
        %v883 = vmul.f32 %v882, %v709
        %v884 = vmul.f32 %v881, %v713
        %885 = vrot.lane.b32.xlu0 %v663, 15
        %v886 = vpop.permute.xlu0 %885
        %887 = vrot.lane.b32.xlu0 %v665, 15
        %v888 = vpop.permute.xlu0 %887
        %v889 = vsel %vm720, %v886, %v888
        %v890 = vsel %vm720, %v888, %v886
        %v891 = vmul.f32 %v890, %v726
        %v892 = vmul.f32 %v889, %v730
        %893 = vrot.lane.b32.xlu0 %v663, 1
        %v894 = vpop.permute.xlu0 %893
        %895 = vrot.lane.b32.xlu0 %v665, 1
        %v896 = vpop.permute.xlu0 %895
        %v897 = vsel %vm737, %v894, %v896
        %v898 = vsel %vm737, %v896, %v894
        %v899 = vmul.f32 %v898, %v743
        %v900 = vmul.f32 %v897, %v747
        %901 = vrot.lane.b32.xlu0 %v663, 127
        %v902 = vpop.permute.xlu0 %901
        %903 = vrot.lane.b32.xlu0 %v665, 127
        %v904 = vpop.permute.xlu0 %903
        %v905 = vsel %vm754, %v902, %v904
        %v906 = vsel %vm754, %v904, %v902
        %v907 = vmul.f32 %v905, %v760
        %v908 = vmul.f32 %v906, %v764
        %909 = vrot.lane.b32.xlu0 %v663, 113
        %v910 = vpop.permute.xlu0 %909
        %911 = vrot.lane.b32.xlu0 %v665, 113
        %v912 = vpop.permute.xlu0 %911
        %v913 = vsel %vm771, %v910, %v912
        %v914 = vsel %vm771, %v912, %v910
        %v915 = vmul.f32 %v913, %v777
        %v916 = vmul.f32 %v914, %v781
        %917 = vrot.lane.b32.xlu0 %v663, 112
        %v918 = vpop.permute.xlu0 %917
        %919 = vrot.lane.b32.xlu0 %v665, 112
        %v920 = vpop.permute.xlu0 %919
        %v921 = vsel %vm788, %v918, %v920
        %v922 = vsel %vm788, %v920, %v918
        %v923 = vmul.f32 %v921, %v794
        %v924 = vmul.f32 %v922, %v798
        %925 = vrot.lane.b32.xlu0 %v663, 111
        %v926 = vpop.permute.xlu0 %925
        %927 = vrot.lane.b32.xlu0 %v665, 111
        %v928 = vpop.permute.xlu0 %927
        %v929 = vsel %vm805, %v926, %v928
        %v930 = vsel %vm805, %v928, %v926
        %v931 = vmul.f32 %v929, %v811
        %v932 = vmul.f32 %v930, %v815
        %v935 = vrot.slane %v883, 6
        %v936 = vrot.slane %v884, 6
        %v941 = vrot.slane %v891, 4
        %v942 = vrot.slane %v892, 4
        %v947 = vrot.slane %v899, 2
        %v948 = vrot.slane %v900, 2
        %v953 = vrot.slane %v907, 6
        %v954 = vrot.slane %v908, 6
        %v959 = vrot.slane %v915, 4
        %v960 = vrot.slane %v916, 4
        %v965 = vrot.slane %v923, 2
        %v966 = vrot.slane %v924, 2
        %v969 = vsel %vm854, %v875, %v935
        %v970 = vsel %vm854, %v876, %v936
        %v971 = vsel %vm496, %v969, %v941
        %v972 = vsel %vm496, %v970, %v942
        %v973 = vsel %vm859, %v971, %v947
        %v974 = vsel %vm859, %v972, %v948
        %v975 = vsel %vm854, %v663, %v953
        %v976 = vsel %vm854, %v665, %v954
        %v977 = vsel %vm496, %v975, %v959
        %v978 = vsel %vm496, %v976, %v960
        %v979 = vsel %vm859, %v977, %v965
        %v980 = vsel %vm859, %v978, %v966
        %vm981 = vcmask 146432
        %v983 = vsel %vm981, %v868, 0
        %v986 = vsel %vm854, %v931, 0
        %v989 = vsel %vm854, %v932, 0
        %991 = vmatprep.subr.mxu0 0.0
        %992 = vmatpush1.msra.mxu0 0.0
        %993 = vmatprep.subr.mxu0 0.0
        %994 = vmatpush1.msra.mxu0 0.0
        %995 = vmatprep.subr.mxu0 0.0
        %996 = vmatpush1.msra.mxu0 0.0
        %997 = vmatprep.subr.mxu0 0.0
        %998 = vmatpush1.msra.mxu0 0.0
        %999 = vmatprep.subr.mxu0 0.0
        %1000 = vmatpush1.msra.mxu0 0.0
        %1001 = vmatprep.subr.mxu0 0.0
        %1002 = vmatpush1.msra.mxu0 0.0
        %1003 = vmatprep.subr.mxu0 0.0
        %1004 = vmatpush1.msra.mxu0 0.0
        %1005 = vmatprep.subr.mxu0 0.0
        %1006 = vmatpush1.msra.mxu0 0.0
        %1007 = vmatprep.subr.mxu0 0.0
        %1008 = vmatpush1.msra.mxu0 0.0
        %1009 = vmatprep.subr.mxu0 0.0
        %1010 = vmatpush1.msra.mxu0 0.0
        %1011 = vmatprep.subr.mxu0 0.0
        %1012 = vmatpush1.msra.mxu0 0.0
        %1013 = vmatprep.subr.mxu0 0.0
        %1014 = vmatpush1.msra.mxu0 0.0
        %1015 = vmatprep.subr.mxu0 0.0
        %1016 = vmatpush1.msra.mxu0 0.0
        %1017 = vmatprep.subr.mxu0 %v989
        %1018 = vmatpush1.msra.mxu0 %v986
        %1019 = vmatprep.subr.mxu0 %v980
        %1020 = vmatpush1.msra.mxu0 %v979
        %1021 = vmatprep.subr.mxu0 %v974
        %1022 = vmatpush1.msra.mxu0 %v973
        %1023 = vmatprep.subr.mxu0 0.0
        %1024 = vmatpush2.msra.mxu0 0.0
        %1025 = vmatprep.subr.mxu0 0.0
        %1026 = vmatpush2.msra.mxu0 0.0
        %1027 = vmatprep.subr.mxu0 0.0
        %1028 = vmatpush2.msra.mxu0 0.0
        %1029 = vmatprep.subr.mxu0 0.0
        %1030 = vmatpush2.msra.mxu0 0.0
        %1031 = vmatprep.subr.mxu0 0.0
        %1032 = vmatpush2.msra.mxu0 0.0
        %1033 = vmatprep.subr.mxu0 0.0
        %1034 = vmatpush2.msra.mxu0 0.0
        %1035 = vmatprep.subr.mxu0 0.0
        %1036 = vmatpush2.msra.mxu0 0.0
        %1037 = vmatprep.subr.mxu0 0.0
        %1038 = vmatpush2.msra.mxu0 0.0
        %1039 = vmatprep.subr.mxu0 0.0
        %1040 = vmatpush2.msra.mxu0 0.0
        %1041 = vmatprep.subr.mxu0 0.0
        %1042 = vmatpush2.msra.mxu0 0.0
        %1043 = vmatprep.subr.mxu0 0.0
        %1044 = vmatpush2.msra.mxu0 0.0
        %1045 = vmatprep.subr.mxu0 0.0
        %1046 = vmatpush2.msra.mxu0 0.0
        %1047 = vmatprep.subr.mxu0 0.0
        %1048 = vmatpush2.msra.mxu0 0.0
        %1049 = vmatprep.subr.mxu0 0.0
        %1050 = vmatpush2.msra.mxu0 0.0
        %1051 = vmatprep.subr.mxu0 0.0
        %1052 = vmatpush2.msra.mxu0 0.0
        %1053 = vmatprep.subr.mxu0 0.0
        %1054 = vmatpush2.msra.mxu0 0.0
        %1055 = vmatprep.mubr.f32.mxu0 0.0
        %1056 = vmatmul.mubr.f32.gmra.mxu0 %v983
        %v1057 = vpop.f32.mrf.mxu0
        %v1058 = vadd.f32 0.0, %v1057
        %v1059 = vpop.f32.mrf.mxu0
        %v1060 = vadd.f32 0.0, %v1059
        %1061 = vdwg.mxu0
        %v1063 = vsel %vm981, %v667, 0
        %v1066 = vsel %vm854, %v816, 0
        %v1069 = vsel %vm854, %v817, 0
        %1071 = vmatprep.subr.mxu0 0.0
        %1072 = vmatpush1.msra.mxu0 0.0
        %1073 = vmatprep.subr.mxu0 0.0
        %1074 = vmatpush1.msra.mxu0 0.0
        %1075 = vmatprep.subr.mxu0 0.0
        %1076 = vmatpush1.msra.mxu0 0.0
        %1077 = vmatprep.subr.mxu0 0.0
        %1078 = vmatpush1.msra.mxu0 0.0
        %1079 = vmatprep.subr.mxu0 0.0
        %1080 = vmatpush1.msra.mxu0 0.0
        %1081 = vmatprep.subr.mxu0 0.0
        %1082 = vmatpush1.msra.mxu0 0.0
        %1083 = vmatprep.subr.mxu0 0.0
        %1084 = vmatpush1.msra.mxu0 0.0
        %1085 = vmatprep.subr.mxu0 0.0
        %1086 = vmatpush1.msra.mxu0 0.0
        %1087 = vmatprep.subr.mxu0 0.0
        %1088 = vmatpush1.msra.mxu0 0.0
        %1089 = vmatprep.subr.mxu0 0.0
        %1090 = vmatpush1.msra.mxu0 0.0
        %1091 = vmatprep.subr.mxu0 0.0
        %1092 = vmatpush1.msra.mxu0 0.0
        %1093 = vmatprep.subr.mxu0 0.0
        %1094 = vmatpush1.msra.mxu0 0.0
        %1095 = vmatprep.subr.mxu0 0.0
        %1096 = vmatpush1.msra.mxu0 0.0
        %1097 = vmatprep.subr.mxu0 %v1069
        %1098 = vmatpush1.msra.mxu0 %v1066
        %1099 = vmatprep.subr.mxu0 %v867
        %1100 = vmatpush1.msra.mxu0 %v866
        %1101 = vmatprep.subr.mxu0 %v861
        %1102 = vmatpush1.msra.mxu0 %v860
        %1103 = vmatprep.subr.mxu0 0.0
        %1104 = vmatpush2.msra.mxu0 0.0
        %1105 = vmatprep.subr.mxu0 0.0
        %1106 = vmatpush2.msra.mxu0 0.0
        %1107 = vmatprep.subr.mxu0 0.0
        %1108 = vmatpush2.msra.mxu0 0.0
        %1109 = vmatprep.subr.mxu0 0.0
        %1110 = vmatpush2.msra.mxu0 0.0
        %1111 = vmatprep.subr.mxu0 0.0
        %1112 = vmatpush2.msra.mxu0 0.0
        %1113 = vmatprep.subr.mxu0 0.0
        %1114 = vmatpush2.msra.mxu0 0.0
        %1115 = vmatprep.subr.mxu0 0.0
        %1116 = vmatpush2.msra.mxu0 0.0
        %1117 = vmatprep.subr.mxu0 0.0
        %1118 = vmatpush2.msra.mxu0 0.0
        %1119 = vmatprep.subr.mxu0 0.0
        %1120 = vmatpush2.msra.mxu0 0.0
        %1121 = vmatprep.subr.mxu0 0.0
        %1122 = vmatpush2.msra.mxu0 0.0
        %1123 = vmatprep.subr.mxu0 0.0
        %1124 = vmatpush2.msra.mxu0 0.0
        %1125 = vmatprep.subr.mxu0 0.0
        %1126 = vmatpush2.msra.mxu0 0.0
        %1127 = vmatprep.subr.mxu0 0.0
        %1128 = vmatpush2.msra.mxu0 0.0
        %1129 = vmatprep.subr.mxu0 0.0
        %1130 = vmatpush2.msra.mxu0 0.0
        %1131 = vmatprep.subr.mxu0 0.0
        %1132 = vmatpush2.msra.mxu0 0.0
        %1133 = vmatprep.subr.mxu0 0.0
        %1134 = vmatpush2.msra.mxu0 0.0
        %1135 = vmatprep.mubr.f32.mxu0 0.0
        %1136 = vmatmul.mubr.f32.gmra.mxu0 %v1063
        %v1137 = vpop.f32.mrf.mxu0
        %v1138 = vadd.f32 %v1058, %v1137
        %v1139 = vpop.f32.mrf.mxu0
        %v1140 = vadd.f32 %v1060, %v1139
        %1141 = vdwg.mxu0
        %v1142 = vld [vmem:[%s8] sm:$0x3]
        %1144 = vset.pattern.permute.xlu0 0
        %1145 = vperm.xlu0 %1144, %v1142
        %v1146 = vpop.permute.xlu0 %1145
        %v1148 = vmul.f32 %v1138, %v1146
        %v1149 = vmul.f32 %v1140, %v1146
        %v1150 = vld [vmem:[%s9] sm:$0x3]
        %1152 = vset.pattern.permute.xlu0 0
        %1153 = vperm.xlu0 %1152, %v1150
        %v1154 = vpop.permute.xlu0 %1153
        %v1156 = vadd.f32 %v1148, %v1154
        %v1157 = vadd.f32 %v1149, %v1154
        %v1158 = vmax.f32 %v1156, 0.0
        %v1159 = vmax.f32 %v1157, 0.0
        %v1160 = vld [vmem:[%s10] sm:$0x3]
        %1161 = vrot.lane.b32.xlu0 %v1158, 17
        %v1162 = vpop.permute.xlu0 %1161
        %1163 = vrot.lane.b32.xlu0 %v1159, 17
        %v1164 = vpop.permute.xlu0 %1163
        %v1165 = vsel %vm686, %v1162, %v1164
        %v1166 = vsel %vm686, %v1164, %v1162
        %v1167 = vmul.f32 %v1166, %v692
        %v1168 = vmul.f32 %v1165, %v696
        %1169 = vrot.lane.b32.xlu0 %v1158, 16
        %v1170 = vpop.permute.xlu0 %1169
        %1171 = vrot.lane.b32.xlu0 %v1159, 16
        %v1172 = vpop.permute.xlu0 %1171
        %v1173 = vsel %vm703, %v1170, %v1172
        %v1174 = vsel %vm703, %v1172, %v1170
        %v1175 = vmul.f32 %v1174, %v709
        %v1176 = vmul.f32 %v1173, %v713
        %1177 = vrot.lane.b32.xlu0 %v1158, 15
        %v1178 = vpop.permute.xlu0 %1177
        %1179 = vrot.lane.b32.xlu0 %v1159, 15
        %v1180 = vpop.permute.xlu0 %1179
        %v1181 = vsel %vm720, %v1178, %v1180
        %v1182 = vsel %vm720, %v1180, %v1178
        %v1183 = vmul.f32 %v1182, %v726
        %v1184 = vmul.f32 %v1181, %v730
        %1185 = vrot.lane.b32.xlu0 %v1158, 1
        %v1186 = vpop.permute.xlu0 %1185
        %1187 = vrot.lane.b32.xlu0 %v1159, 1
        %v1188 = vpop.permute.xlu0 %1187
        %v1189 = vsel %vm737, %v1186, %v1188
        %v1190 = vsel %vm737, %v1188, %v1186
        %v1191 = vmul.f32 %v1190, %v743
        %v1192 = vmul.f32 %v1189, %v747
        %1193 = vrot.lane.b32.xlu0 %v1158, 127
        %v1194 = vpop.permute.xlu0 %1193
        %1195 = vrot.lane.b32.xlu0 %v1159, 127
        %v1196 = vpop.permute.xlu0 %1195
        %v1197 = vsel %vm754, %v1194, %v1196
        %v1198 = vsel %vm754, %v1196, %v1194
        %v1199 = vmul.f32 %v1197, %v760
        %v1200 = vmul.f32 %v1198, %v764
        %1201 = vrot.lane.b32.xlu0 %v1158, 113
        %v1202 = vpop.permute.xlu0 %1201
        %1203 = vrot.lane.b32.xlu0 %v1159, 113
        %v1204 = vpop.permute.xlu0 %1203
        %v1205 = vsel %vm771, %v1202, %v1204
        %v1206 = vsel %vm771, %v1204, %v1202
        %v1207 = vmul.f32 %v1205, %v777
        %v1208 = vmul.f32 %v1206, %v781
        %1209 = vrot.lane.b32.xlu0 %v1158, 112
        %v1210 = vpop.permute.xlu0 %1209
        %1211 = vrot.lane.b32.xlu0 %v1159, 112
        %v1212 = vpop.permute.xlu0 %1211
        %v1213 = vsel %vm788, %v1210, %v1212
        %v1214 = vsel %vm788, %v1212, %v1210
        %v1215 = vmul.f32 %v1213, %v794
        %v1216 = vmul.f32 %v1214, %v798
        %1217 = vrot.lane.b32.xlu0 %v1158, 111
        %v1218 = vpop.permute.xlu0 %1217
        %1219 = vrot.lane.b32.xlu0 %v1159, 111
        %v1220 = vpop.permute.xlu0 %1219
        %v1221 = vsel %vm805, %v1218, %v1220
        %v1222 = vsel %vm805, %v1220, %v1218
        %v1223 = vmul.f32 %v1221, %v811
        %v1224 = vmul.f32 %v1222, %v815
        %v1227 = vrot.slane %v1175, 6
        %v1228 = vrot.slane %v1176, 6
        %v1233 = vrot.slane %v1183, 4
        %v1234 = vrot.slane %v1184, 4
        %v1239 = vrot.slane %v1191, 2
        %v1240 = vrot.slane %v1192, 2
        %v1245 = vrot.slane %v1199, 6
        %v1246 = vrot.slane %v1200, 6
        %v1251 = vrot.slane %v1207, 4
        %v1252 = vrot.slane %v1208, 4
        %v1257 = vrot.slane %v1215, 2
        %v1258 = vrot.slane %v1216, 2
        %v1261 = vsel %vm854, %v1167, %v1227
        %v1262 = vsel %vm854, %v1168, %v1228
        %v1263 = vsel %vm496, %v1261, %v1233
        %v1264 = vsel %vm496, %v1262, %v1234
        %v1265 = vsel %vm859, %v1263, %v1239
        %v1266 = vsel %vm859, %v1264, %v1240
        %v1267 = vsel %vm854, %v1158, %v1245
        %v1268 = vsel %vm854, %v1159, %v1246
        %v1269 = vsel %vm496, %v1267, %v1251
        %v1270 = vsel %vm496, %v1268, %v1252
        %v1271 = vsel %vm859, %v1269, %v1257
        %v1272 = vsel %vm859, %v1270, %v1258
        %v1274 = vsel %vm981, %v1160, 0
        %v1277 = vsel %vm854, %v1223, 0
        %v1280 = vsel %vm854, %v1224, 0
        %1282 = vmatprep.subr.mxu0 0.0
        %1283 = vmatpush1.msra.mxu0 0.0
        %1284 = vmatprep.subr.mxu0 0.0
        %1285 = vmatpush1.msra.mxu0 0.0
        %1286 = vmatprep.subr.mxu0 0.0
        %1287 = vmatpush1.msra.mxu0 0.0
        %1288 = vmatprep.subr.mxu0 0.0
        %1289 = vmatpush1.msra.mxu0 0.0
        %1290 = vmatprep.subr.mxu0 0.0
        %1291 = vmatpush1.msra.mxu0 0.0
        %1292 = vmatprep.subr.mxu0 0.0
        %1293 = vmatpush1.msra.mxu0 0.0
        %1294 = vmatprep.subr.mxu0 0.0
        %1295 = vmatpush1.msra.mxu0 0.0
        %1296 = vmatprep.subr.mxu0 0.0
        %1297 = vmatpush1.msra.mxu0 0.0
        %1298 = vmatprep.subr.mxu0 0.0
        %1299 = vmatpush1.msra.mxu0 0.0
        %1300 = vmatprep.subr.mxu0 0.0
        %1301 = vmatpush1.msra.mxu0 0.0
        %1302 = vmatprep.subr.mxu0 0.0
        %1303 = vmatpush1.msra.mxu0 0.0
        %1304 = vmatprep.subr.mxu0 0.0
        %1305 = vmatpush1.msra.mxu0 0.0
        %1306 = vmatprep.subr.mxu0 0.0
        %1307 = vmatpush1.msra.mxu0 0.0
        %1308 = vmatprep.subr.mxu0 %v1280
        %1309 = vmatpush1.msra.mxu0 %v1277
        %1310 = vmatprep.subr.mxu0 %v1272
        %1311 = vmatpush1.msra.mxu0 %v1271
        %1312 = vmatprep.subr.mxu0 %v1266
        %1313 = vmatpush1.msra.mxu0 %v1265
        %1314 = vmatprep.subr.mxu0 0.0
        %1315 = vmatpush2.msra.mxu0 0.0
        %1316 = vmatprep.subr.mxu0 0.0
        %1317 = vmatpush2.msra.mxu0 0.0
        %1318 = vmatprep.subr.mxu0 0.0
        %1319 = vmatpush2.msra.mxu0 0.0
        %1320 = vmatprep.subr.mxu0 0.0
        %1321 = vmatpush2.msra.mxu0 0.0
        %1322 = vmatprep.subr.mxu0 0.0
        %1323 = vmatpush2.msra.mxu0 0.0
        %1324 = vmatprep.subr.mxu0 0.0
        %1325 = vmatpush2.msra.mxu0 0.0
        %1326 = vmatprep.subr.mxu0 0.0
        %1327 = vmatpush2.msra.mxu0 0.0
        %1328 = vmatprep.subr.mxu0 0.0
        %1329 = vmatpush2.msra.mxu0 0.0
        %1330 = vmatprep.subr.mxu0 0.0
        %1331 = vmatpush2.msra.mxu0 0.0
        %1332 = vmatprep.subr.mxu0 0.0
        %1333 = vmatpush2.msra.mxu0 0.0
        %1334 = vmatprep.subr.mxu0 0.0
        %1335 = vmatpush2.msra.mxu0 0.0
        %1336 = vmatprep.subr.mxu0 0.0
        %1337 = vmatpush2.msra.mxu0 0.0
        %1338 = vmatprep.subr.mxu0 0.0
        %1339 = vmatpush2.msra.mxu0 0.0
        %1340 = vmatprep.subr.mxu0 0.0
        %1341 = vmatpush2.msra.mxu0 0.0
        %1342 = vmatprep.subr.mxu0 0.0
        %1343 = vmatpush2.msra.mxu0 0.0
        %1344 = vmatprep.subr.mxu0 0.0
        %1345 = vmatpush2.msra.mxu0 0.0
        %1346 = vmatprep.mubr.f32.mxu0 0.0
        %1347 = vmatmul.mubr.f32.gmra.mxu0 %v1274
        %v1348 = vpop.f32.mrf.mxu0
        %v1349 = vadd.f32 0.0, %v1348
        %v1350 = vpop.f32.mrf.mxu0
        %v1351 = vadd.f32 0.0, %v1350
        %1352 = vdwg.mxu0
        %v1353 = vld [vmem:[%s11] sm:$0x3]
        %1355 = vset.pattern.permute.xlu0 0
        %1356 = vperm.xlu0 %1355, %v1353
        %v1357 = vpop.permute.xlu0 %1356
        %v1359 = vmul.f32 %v1349, %v1357
        %v1360 = vmul.f32 %v1351, %v1357
        %v1361 = vld [vmem:[%s12] sm:$0x3]
        %1363 = vset.pattern.permute.xlu0 0
        %1364 = vperm.xlu0 %1363, %v1361
        %v1365 = vpop.permute.xlu0 %1364
        %v1367 = vadd.f32 %v1359, %v1365
        %v1368 = vadd.f32 %v1360, %v1365
        %v1369 = vmax.f32 %v1367, 0.0
        %v1370 = vmax.f32 %v1368, 0.0
        %v1373 = vcombine.low %v1369, %v1370
        %v1375 = vunpack.c.l.s4 1983009808
        %v1376 = vunpack.c.0.s8 %v1375
        %v1377 = vlaneseq
        %v1378 = vshrl.u32 %v1377, 7
        %v1379 = vsub.s32 %v1376, %v1378
        %v1380 = vrot.slane %v1373, %v1379
        %1382 = vst [vmem:[%s476] sm:$0xf] %v1380
        %s1383 = sand.u32 %s320, 1
        %s1384 = scalar_lea.sflag [#allocation4], %s1383
        %s1385 = sand.u32 %s320, 1
        %s1386 = smul.addr %s1385, 4
        %s1387 = scalar_lea.vmem [#allocation7], %s1386
        // Predicated region
        $region81: #{tpu_custom_call.1} parent=71 // pred_check
          %p1388 = pneg %p330
        $region82: #{tpu_custom_call.1} parent=71 // pred_check_branch
          %1390 = sbr.rel (%p1388) target = $region84
        $region83: #{tpu_custom_call.1} parent=71 // pred_region
          %s1392 = ssub.s32 64, 64
          %1393 = vsyncadd %s1384, %s1392
          %s1394 = smul.addr %s29, 2
          %s1395 = smul.addr %s1394, 32
          %s1396 = scalar_lea.hbm %s13, %s1395
          %s1398 = sshll.u32 %s1387, 4
          %s1399 = int_to_ptr.vmem [resolvable:$true] %s1398
          %1401 = dma.vmem_to_hbm [thread:$0]  %s1399, 64, %s1396, %s1384
        $region84: #{tpu_custom_call.1} parent=71 // pred_fallthru
          _
      $region72: #{tpu_custom_call.1} parent=5 // pred_fallthru
        _
      %p1402 = scmp.le.s32.totalorder 2, %s24
      // Predicated region
      $region85: #{tpu_custom_call.1} parent=5 // pred_check
        %p1403 = pneg %p1402
      $region86: #{tpu_custom_call.1} parent=5 // pred_check_branch
        %1405 = sbr.rel (%p1403) target = $region88
      $region87: #{tpu_custom_call.1} parent=5 // pred_region
        %s1406 = ssub.s32 %s24, 2
        // Predicated region
        $region89: #{tpu_custom_call.1} parent=87 // pred_check
          %p1407 = pneg %p336
        $region90: #{tpu_custom_call.1} parent=87 // pred_check_branch
          %1409 = sbr.rel (%p1407) target = $region92
        $region91: #{tpu_custom_call.1} parent=87 // pred_region
          %s1410 = sand.u32 %s321, 1
          %s1411 = scalar_lea.sflag [#allocation4], %s1410
          %s1412 = sand.u32 %s321, 1
          %s1413 = smul.addr %s1412, 4
          %s1414 = scalar_lea.vmem [#allocation7], %s1413
          %1415 = dma.done %s1411, 64
        $region92: #{tpu_custom_call.1} parent=87 // pred_fallthru
          _
      $region88: #{tpu_custom_call.1} parent=5 // pred_fallthru
        _
    $region6: #{tpu_custom_call.1} parent=1 // loop_footer
      %s28 = sadd.s32 1, %s24
    $region7: #{tpu_custom_call.1} parent=1 // loop_footer_branch
      %23 = sbr.rel target = $region3
    $region8: #{tpu_custom_call.1} parent=1 // loop_exit
      _
    %1416 = vsyncpa [#allocation3], 1
    %s1417 = scalar_lea.sflag [#allocation3], 1
    %1418 = vsyncpa %s1417, 1
    %1419 = vsyncpa [#allocation6], 1
    %1420 = vsyncpa [#allocation4], 1
    %s1421 = scalar_lea.sflag [#allocation4], 1
    %1422 = vsyncpa %s1421, 1

</llo_original>
